<compile_context>
chip_gen: v6e
topology: v6e:2x2x1
jax: 0.10.0
libtpu: 0.0.40
codegen_flags: <defaults>
</compile_context>

<pallas_src>
import functools
import math

import jax
import jax.numpy as jnp
from jax.experimental import pallas as pl
from jax.experimental.pallas import tpu as pltpu


def _perceiver_xattn_kernel(
    x_ref, lat_ref,
    g1_ref, b1_ref, g2_ref, b2_ref,
    wq_ref, wk_ref, wv_ref, wout_ref,
    o_ref,
    *, heads, dim_head, matmul_dtype, approx_recip,
):
    eps = 1e-5  # PyTorch nn.LayerNorm default
    f32 = jnp.float32

    x = x_ref[0]      # (N1, KV_DIM)
    lat = lat_ref[0]  # (TQ, DIM)

    def layer_norm(t, gamma, beta):
        mu = jnp.mean(t, axis=-1, keepdims=True)
        var = jnp.mean(jnp.square(t - mu), axis=-1, keepdims=True)
        return (t - mu) * jax.lax.rsqrt(var + eps) * gamma + beta

    # LayerNorm stays f32; only MXU operands are (optionally) downcast.
    xn = layer_norm(x, g1_ref[...], b1_ref[...]).astype(matmul_dtype)
    latn = layer_norm(lat, g2_ref[...], b2_ref[...]).astype(matmul_dtype)

    # Projections (MXU). Scale for Q/K is already folded into the weights.
    q = jnp.dot(latn, wq_ref[...], preferred_element_type=f32)  # (TQ, INNER)
    k = jnp.dot(xn, wk_ref[...], preferred_element_type=f32)    # (N1, INNER)
    v = jnp.dot(xn, wv_ref[...], preferred_element_type=f32)    # (N1, INNER)

    tq = lat.shape[0]
    dim_out = o_ref.shape[-1]
    acc = jnp.zeros((tq, dim_out), f32)

    for h in range(heads):
        lo = h * dim_head
        hi = lo + dim_head
        qh = q[:, lo:hi].astype(matmul_dtype)   # (TQ, DH) -- DH-aligned slice
        kh = k[:, lo:hi].astype(matmul_dtype)   # (N1, DH)
        vh = v[:, lo:hi].astype(matmul_dtype)   # (N1, DH)

        # Q . K^T via contracting dims -- no transposed copy of K.
        s = jax.lax.dot_general(
            qh, kh, (((1,), (1,)), ((), ())),
            preferred_element_type=f32)          # (TQ, N1), f32

        # Numerically-stable softmax, f32; normalization deferred to after P@V.
        m = jnp.max(s, axis=-1, keepdims=True)
        p = jnp.exp(s - m)
        denom = jnp.sum(p, axis=-1, keepdims=True)

        oh = jnp.dot(p.astype(matmul_dtype), vh,
                     preferred_element_type=f32)                 # (TQ, DH)
        oh = oh * pl.reciprocal(denom, approx=approx_recip)

        # Accumulate the output projection per head -> no concatenate.
        acc = acc + jnp.dot(oh.astype(matmul_dtype), wout_ref[lo:hi, :],
                            preferred_element_type=f32)          # (TQ, DIM)

    o_ref[0] = acc.astype(o_ref.dtype)


def perceiver_cross_attention(x, latents, params, *, heads, dim_head,
                              block_q=None, matmul_dtype=jnp.float32):
    """x: (B, N1, KV_DIM), latents: (B, N2, DIM) -> (B, N2, DIM)."""
    b, n1, kv_dim = x.shape
    _, n2, dim = latents.shape
    inner = heads * dim_head

    if block_q is None:
        block_q = n2
    block_q = min(block_q, n2)
    num_q = pl.cdiv(n2, block_q)

    scale = 1.0 / math.sqrt(math.sqrt(dim_head))

    g1 = params["norm1_w"].reshape(1, kv_dim).astype(jnp.float32)
    b1 = params["norm1_b"].reshape(1, kv_dim).astype(jnp.float32)
    g2 = params["norm2_w"].reshape(1, dim).astype(jnp.float32)
    b2 = params["norm2_b"].reshape(1, dim).astype(jnp.float32)

    # PyTorch Linear stores (out, in); transpose to (in, out) for right-matmul.
    # Fold the dim_head**-0.25 attention scale into BOTH the Q and K weights
    # (host-side, one-time) and split the fused KV weight so the kernel never
    # lane-slices the fused projection result.
    wq_t = (params["to_q_w"].T * scale).astype(matmul_dtype)       # (DIM, INNER)
    wkv_t = params["to_kv_w"].T                                    # (KV_DIM, 2*INNER)
    wk_t = (wkv_t[:, :inner] * scale).astype(matmul_dtype)         # (KV_DIM, INNER)
    wv_t = wkv_t[:, inner:].astype(matmul_dtype)                   # (KV_DIM, INNER)
    wout_t = params["to_out_w"].T.astype(matmul_dtype)             # (INNER, DIM)

    kernel = functools.partial(
        _perceiver_xattn_kernel,
        heads=heads, dim_head=dim_head, matmul_dtype=matmul_dtype,
        # Exact reciprocal in the f32 path (keeps 1e-4 parity with the f32
        # reference); EUP approx reciprocal in the bf16 fast path.
        approx_recip=(matmul_dtype != jnp.float32),
    )

    # Grid: (batch, q-tiles). Both axes are independent ("parallel") so a
    # v7x megacore can split work even at small batch. x / K / V are shared
    # across q-tiles (constant block index along the q axis).
    # NOTE: weights have constant index_maps; keeping them as plain BlockSpecs
    # (double-buffered) is fine at these sizes -- for very large weights on
    # v7x's 64 MiB VMEM, single-buffer them or raise vmem_limit_bytes.
    grid_spec = pltpu.PrefetchScalarGridSpec(
        num_scalar_prefetch=0,
        grid=(b, num_q),
        in_specs=[
            pl.BlockSpec((1, n1, kv_dim), lambda bi, qi: (bi, 0, 0)),     # x
            pl.BlockSpec((1, block_q, dim), lambda bi, qi: (bi, qi, 0)),  # latents
            pl.BlockSpec((1, kv_dim), lambda bi, qi: (0, 0)),             # norm1 gamma
            pl.BlockSpec((1, kv_dim), lambda bi, qi: (0, 0)),             # norm1 beta
            pl.BlockSpec((1, dim), lambda bi, qi: (0, 0)),                # norm2 gamma
            pl.BlockSpec((1, dim), lambda bi, qi: (0, 0)),                # norm2 beta
            pl.BlockSpec((dim, inner), lambda bi, qi: (0, 0)),            # Wq^T * scale
            pl.BlockSpec((kv_dim, inner), lambda bi, qi: (0, 0)),         # Wk^T * scale
            pl.BlockSpec((kv_dim, inner), lambda bi, qi: (0, 0)),         # Wv^T
            pl.BlockSpec((inner, dim), lambda bi, qi: (0, 0)),            # Wout^T
        ],
        out_specs=pl.BlockSpec((1, block_q, dim), lambda bi, qi: (bi, qi, 0)),
    )

    w_bytes = (wq_t.size + wk_t.size + wv_t.size + wout_t.size) \
        * jnp.dtype(matmul_dtype).itemsize
    cost = pl.CostEstimate(
        flops=int(2 * b * (n2 * dim * inner          # Q projection
                           + 2 * n1 * kv_dim * inner  # K, V projections
                           + 2 * n2 * n1 * inner      # QK^T and P@V (all heads)
                           + n2 * inner * dim)),      # output projection
        transcendentals=int(b * heads * n2 * n1),     # softmax exp
        bytes_accessed=int((x.size + 2 * latents.size
                            + g1.size + b1.size + g2.size + b2.size) * 4
                           + w_bytes),
    )

    return pl.pallas_call(
        kernel,
        out_shape=jax.ShapeDtypeStruct((b, n2, dim), jnp.float32),
        grid_spec=grid_spec,
        compiler_params=pltpu.CompilerParams(
            dimension_semantics=("parallel", "parallel"),
        ),
        cost_estimate=cost,
    )(x, latents, g1, b1, g2, b2, wq_t, wk_t, wv_t, wout_t)


def perceiver_cross_attention_ref(x, latents, params, *, heads, dim_head):
    """Pure-JAX reference mirroring the PyTorch forward exactly."""
    eps = 1e-5

    def ln(t, g, b):
        mu = jnp.mean(t, axis=-1, keepdims=True)
        var = jnp.mean((t - mu) ** 2, axis=-1, keepdims=True)
        return (t - mu) / jnp.sqrt(var + eps) * g + b

    xn = ln(x, params["norm1_w"], params["norm1_b"])
    latn = ln(latents, params["norm2_w"], params["norm2_b"])
    b_, n2, _ = latents.shape
    q = latn @ params["to_q_w"].T
    kv = xn @ params["to_kv_w"].T
    inner = heads * dim_head
    k, v = kv[..., :inner], kv[..., inner:]

    def to_heads(t):
        bs, length, _ = t.shape
        return t.reshape(bs, length, heads, dim_head).transpose(0, 2, 1, 3)

    q, k, v = to_heads(q), to_heads(k), to_heads(v)
    scale = 1.0 / math.sqrt(math.sqrt(dim_head))
    w = jnp.einsum("bhqd,bhkd->bhqk", q * scale, k * scale)
    w = jax.nn.softmax(w.astype(jnp.float32), axis=-1)
    out = jnp.einsum("bhqk,bhkd->bhqd", w, v)
    out = out.transpose(0, 2, 1, 3).reshape(b_, n2, inner)
    return out @ params["to_out_w"].T


if __name__ == "__main__":
    # Small shapes consistent with the module (dim_head kept at the module's
    # 128 so per-head lane slices stay 128-aligned).
    B, N1, N2 = 2, 16, 8
    DIM, KV_DIM = 128, 128
    HEADS, DIM_HEAD = 2, 128
    INNER = HEADS * DIM_HEAD

    key = jax.random.PRNGKey(0)
    keys = jax.random.split(key, 6)
    x = jax.random.normal(keys[0], (B, N1, KV_DIM), dtype=jnp.float32)
    latents = jax.random.normal(keys[1], (B, N2, DIM), dtype=jnp.float32)

    params = {
        "norm1_w": jnp.ones((KV_DIM,), jnp.float32),
        "norm1_b": jnp.zeros((KV_DIM,), jnp.float32),
        "norm2_w": jnp.ones((DIM,), jnp.float32),
        "norm2_b": jnp.zeros((DIM,), jnp.float32),
        "to_q_w": 0.05 * jax.random.normal(keys[2], (INNER, DIM), jnp.float32),
        "to_kv_w": 0.05 * jax.random.normal(keys[3], (2 * INNER, KV_DIM), jnp.float32),
        "to_out_w": 0.05 * jax.random.normal(keys[4], (DIM, INNER), jnp.float32),
    }

    ref = perceiver_cross_attention_ref(x, latents, params,
                                        heads=HEADS, dim_head=DIM_HEAD)

    # f32 MXU operands: bit-tight vs the f32 reference.
    out = perceiver_cross_attention(x, latents, params,
                                    heads=HEADS, dim_head=DIM_HEAD)
    out = jax.block_until_ready(out)
    assert out.shape == (B, N2, DIM)
    assert jnp.allclose(out, ref, atol=1e-4, rtol=1e-4), \
        float(jnp.max(jnp.abs(out - ref)))

    # bf16 MXU-operand fast path (v6e/v7x); f32 accumulation, looser tolerance.
    out_bf16 = perceiver_cross_attention(x, latents, params,
                                         heads=HEADS, dim_head=DIM_HEAD,
                                         matmul_dtype=jnp.bfloat16)
    out_bf16 = jax.block_until_ready(out_bf16)
    assert jnp.allclose(out_bf16, ref, atol=5e-2, rtol=5e-2), \
        float(jnp.max(jnp.abs(out_bf16 - ref)))

    print("KERNEL_OK")
</pallas_src>

<mosaic_0001>
module attributes {stable_mosaic.version = 11 : i64} {
  func.func @_perceiver_xattn_kernel(%arg0: i32, %arg1: i32, %arg2: memref<1x16x128xf32, #tpu.memory_space<vmem>>, %arg3: memref<1x8x128xf32, #tpu.memory_space<vmem>>, %arg4: memref<1x128xf32, #tpu.memory_space<vmem>>, %arg5: memref<1x128xf32, #tpu.memory_space<vmem>>, %arg6: memref<1x128xf32, #tpu.memory_space<vmem>>, %arg7: memref<1x128xf32, #tpu.memory_space<vmem>>, %arg8: memref<128x256xf32, #tpu.memory_space<vmem>>, %arg9: memref<128x256xf32, #tpu.memory_space<vmem>>, %arg10: memref<128x256xf32, #tpu.memory_space<vmem>>, %arg11: memref<256x128xf32, #tpu.memory_space<vmem>>, %arg12: memref<1x8x128xf32, #tpu.memory_space<vmem>>) attributes {dimension_semantics = [#tpu.dimension_semantics<parallel>, #tpu.dimension_semantics<parallel>], iteration_bounds = array<i64: 2, 1>, scalar_prefetch = 0 : i64, scratch_operands = 0 : i64, tpu.core_type = #tpu.core_type<tc>, window_params = [{transform_indices = @transform_0, window_bounds = array<i64: 1, 16, 128>}, {transform_indices = @transform_1, window_bounds = array<i64: 1, 8, 128>}, {pipeline_mode = #tpu.pipeline_mode<synchronous>, transform_indices = @transform_2, window_bounds = array<i64: 1, 128>}, {pipeline_mode = #tpu.pipeline_mode<synchronous>, transform_indices = @transform_3, window_bounds = array<i64: 1, 128>}, {pipeline_mode = #tpu.pipeline_mode<synchronous>, transform_indices = @transform_4, window_bounds = array<i64: 1, 128>}, {pipeline_mode = #tpu.pipeline_mode<synchronous>, transform_indices = @transform_5, window_bounds = array<i64: 1, 128>}, {pipeline_mode = #tpu.pipeline_mode<synchronous>, transform_indices = @transform_6, window_bounds = array<i64: 128, 256>}, {pipeline_mode = #tpu.pipeline_mode<synchronous>, transform_indices = @transform_7, window_bounds = array<i64: 128, 256>}, {pipeline_mode = #tpu.pipeline_mode<synchronous>, transform_indices = @transform_8, window_bounds = array<i64: 128, 256>}, {pipeline_mode = #tpu.pipeline_mode<synchronous>, transform_indices = @transform_9, window_bounds = array<i64: 256, 128>}, {transform_indices = @transform_10, window_bounds = array<i64: 1, 8, 128>}]} {
    %c0 = arith.constant 0 : index
    %c0_0 = arith.constant 0 : index
    %c0_1 = arith.constant 0 : index
    %0 = vector.load %arg2[%c0, %c0_0, %c0_1] : memref<1x16x128xf32, #tpu.memory_space<vmem>>, vector<1x16x128xf32>
    %1 = vector.shape_cast %0 : vector<1x16x128xf32> to vector<16x128xf32>
    %c0_2 = arith.constant 0 : index
    %c0_3 = arith.constant 0 : index
    %c0_4 = arith.constant 0 : index
    %2 = vector.load %arg3[%c0_2, %c0_3, %c0_4] : memref<1x8x128xf32, #tpu.memory_space<vmem>>, vector<1x8x128xf32>
    %3 = vector.shape_cast %2 : vector<1x8x128xf32> to vector<8x128xf32>
    %c0_5 = arith.constant 0 : index
    %c0_6 = arith.constant 0 : index
    %4 = vector.load %arg4[%c0_5, %c0_6] : memref<1x128xf32, #tpu.memory_space<vmem>>, vector<1x128xf32>
    %c0_7 = arith.constant 0 : index
    %c0_8 = arith.constant 0 : index
    %5 = vector.load %arg5[%c0_7, %c0_8] : memref<1x128xf32, #tpu.memory_space<vmem>>, vector<1x128xf32>
    %cst = arith.constant dense<0.000000e+00> : vector<16xf32>
    %6 = vector.multi_reduction <add>, %1, %cst [1] : vector<16x128xf32> to vector<16xf32>
    %7 = vector.shape_cast %6 : vector<16xf32> to vector<16x1xf32>
    %cst_9 = arith.constant 1.280000e+02 : f32
    %8 = vector.broadcast %cst_9 : f32 to vector<16x1xf32>
    %9 = arith.divf %7, %8 : vector<16x1xf32>
    %10 = vector.broadcast %9 : vector<16x1xf32> to vector<16x128xf32>
    %11 = arith.subf %1, %10 : vector<16x128xf32>
    %12 = arith.mulf %11, %11 : vector<16x128xf32>
    %cst_10 = arith.constant dense<0.000000e+00> : vector<16xf32>
    %13 = vector.multi_reduction <add>, %12, %cst_10 [1] : vector<16x128xf32> to vector<16xf32>
    %14 = vector.shape_cast %13 : vector<16xf32> to vector<16x1xf32>
    %cst_11 = arith.constant 1.280000e+02 : f32
    %15 = vector.broadcast %cst_11 : f32 to vector<16x1xf32>
    %16 = arith.divf %14, %15 : vector<16x1xf32>
    %17 = vector.broadcast %9 : vector<16x1xf32> to vector<16x128xf32>
    %18 = arith.subf %1, %17 : vector<16x128xf32>
    %cst_12 = arith.constant 9.99999974E-6 : f32
    %19 = vector.broadcast %cst_12 : f32 to vector<16x1xf32>
    %20 = arith.addf %16, %19 : vector<16x1xf32>
    %21 = math.rsqrt %20 : vector<16x1xf32>
    %22 = vector.broadcast %21 : vector<16x1xf32> to vector<16x128xf32>
    %23 = arith.mulf %18, %22 : vector<16x128xf32>
    %24 = vector.broadcast %4 : vector<1x128xf32> to vector<16x128xf32>
    %25 = arith.mulf %23, %24 : vector<16x128xf32>
    %26 = vector.broadcast %5 : vector<1x128xf32> to vector<16x128xf32>
    %27 = arith.addf %25, %26 : vector<16x128xf32>
    %c0_13 = arith.constant 0 : index
    %c0_14 = arith.constant 0 : index
    %28 = vector.load %arg6[%c0_13, %c0_14] : memref<1x128xf32, #tpu.memory_space<vmem>>, vector<1x128xf32>
    %c0_15 = arith.constant 0 : index
    %c0_16 = arith.constant 0 : index
    %29 = vector.load %arg7[%c0_15, %c0_16] : memref<1x128xf32, #tpu.memory_space<vmem>>, vector<1x128xf32>
    %cst_17 = arith.constant dense<0.000000e+00> : vector<8xf32>
    %30 = vector.multi_reduction <add>, %3, %cst_17 [1] : vector<8x128xf32> to vector<8xf32>
    %31 = vector.shape_cast %30 : vector<8xf32> to vector<8x1xf32>
    %cst_18 = arith.constant 1.280000e+02 : f32
    %32 = vector.broadcast %cst_18 : f32 to vector<8x1xf32>
    %33 = arith.divf %31, %32 : vector<8x1xf32>
    %34 = vector.broadcast %33 : vector<8x1xf32> to vector<8x128xf32>
    %35 = arith.subf %3, %34 : vector<8x128xf32>
    %36 = arith.mulf %35, %35 : vector<8x128xf32>
    %cst_19 = arith.constant dense<0.000000e+00> : vector<8xf32>
    %37 = vector.multi_reduction <add>, %36, %cst_19 [1] : vector<8x128xf32> to vector<8xf32>
    %38 = vector.shape_cast %37 : vector<8xf32> to vector<8x1xf32>
    %cst_20 = arith.constant 1.280000e+02 : f32
    %39 = vector.broadcast %cst_20 : f32 to vector<8x1xf32>
    %40 = arith.divf %38, %39 : vector<8x1xf32>
    %41 = vector.broadcast %33 : vector<8x1xf32> to vector<8x128xf32>
    %42 = arith.subf %3, %41 : vector<8x128xf32>
    %cst_21 = arith.constant 9.99999974E-6 : f32
    %43 = vector.broadcast %cst_21 : f32 to vector<8x1xf32>
    %44 = arith.addf %40, %43 : vector<8x1xf32>
    %45 = math.rsqrt %44 : vector<8x1xf32>
    %46 = vector.broadcast %45 : vector<8x1xf32> to vector<8x128xf32>
    %47 = arith.mulf %42, %46 : vector<8x128xf32>
    %48 = vector.broadcast %28 : vector<1x128xf32> to vector<8x128xf32>
    %49 = arith.mulf %47, %48 : vector<8x128xf32>
    %50 = vector.broadcast %29 : vector<1x128xf32> to vector<8x128xf32>
    %51 = arith.addf %49, %50 : vector<8x128xf32>
    %c0_22 = arith.constant 0 : index
    %c0_23 = arith.constant 0 : index
    %52 = vector.load %arg8[%c0_22, %c0_23] : memref<128x256xf32, #tpu.memory_space<vmem>>, vector<128x256xf32>
    %cst_24 = arith.constant dense<0.000000e+00> : vector<8x256xf32>
    %53 = tpu.matmul %51, %52, %cst_24 {dimension_numbers = #tpu.dot_dimension_numbers<[1], [0], [0], [1], [0, 0, 1, 1], [], []>} : vector<8x128xf32>, vector<128x256xf32>, vector<8x256xf32> -> vector<8x256xf32>
    %c0_25 = arith.constant 0 : index
    %c0_26 = arith.constant 0 : index
    %54 = vector.load %arg9[%c0_25, %c0_26] : memref<128x256xf32, #tpu.memory_space<vmem>>, vector<128x256xf32>
    %cst_27 = arith.constant dense<0.000000e+00> : vector<16x256xf32>
    %55 = tpu.matmul %27, %54, %cst_27 {dimension_numbers = #tpu.dot_dimension_numbers<[1], [0], [0], [1], [0, 0, 1, 1], [], []>} : vector<16x128xf32>, vector<128x256xf32>, vector<16x256xf32> -> vector<16x256xf32>
    %c0_28 = arith.constant 0 : index
    %c0_29 = arith.constant 0 : index
    %56 = vector.load %arg10[%c0_28, %c0_29] : memref<128x256xf32, #tpu.memory_space<vmem>>, vector<128x256xf32>
    %cst_30 = arith.constant dense<0.000000e+00> : vector<16x256xf32>
    %57 = tpu.matmul %27, %56, %cst_30 {dimension_numbers = #tpu.dot_dimension_numbers<[1], [0], [0], [1], [0, 0, 1, 1], [], []>} : vector<16x128xf32>, vector<128x256xf32>, vector<16x256xf32> -> vector<16x256xf32>
    %cst_31 = arith.constant 0.000000e+00 : f32
    %58 = vector.broadcast %cst_31 : f32 to vector<8x128xf32>
    %59 = vector.extract_strided_slice %53 {offsets = [0, 0], sizes = [8, 128], strides = [1, 1]} : vector<8x256xf32> to vector<8x128xf32>
    %60 = vector.extract_strided_slice %55 {offsets = [0, 0], sizes = [16, 128], strides = [1, 1]} : vector<16x256xf32> to vector<16x128xf32>
    %61 = vector.extract_strided_slice %57 {offsets = [0, 0], sizes = [16, 128], strides = [1, 1]} : vector<16x256xf32> to vector<16x128xf32>
    %cst_32 = arith.constant dense<0.000000e+00> : vector<8x16xf32>
    %62 = tpu.matmul %59, %60, %cst_32 {dimension_numbers = #tpu.dot_dimension_numbers<[1], [1], [0], [0], [0, 0, 1, 0], [], []>} : vector<8x128xf32>, vector<16x128xf32>, vector<8x16xf32> -> vector<8x16xf32>
    %cst_33 = arith.constant dense<0xFF800000> : vector<8xf32>
    %63 = vector.multi_reduction <maximumf>, %62, %cst_33 [1] : vector<8x16xf32> to vector<8xf32>
    %64 = vector.shape_cast %63 : vector<8xf32> to vector<8x1xf32>
    %65 = vector.broadcast %64 : vector<8x1xf32> to vector<8x16xf32>
    %66 = arith.subf %62, %65 : vector<8x16xf32>
    %67 = math.exp %66 : vector<8x16xf32>
    %cst_34 = arith.constant dense<0.000000e+00> : vector<8xf32>
    %68 = vector.multi_reduction <add>, %67, %cst_34 [1] : vector<8x16xf32> to vector<8xf32>
    %69 = vector.shape_cast %68 : vector<8xf32> to vector<8x1xf32>
    %cst_35 = arith.constant dense<0.000000e+00> : vector<8x128xf32>
    %70 = tpu.matmul %67, %61, %cst_35 {dimension_numbers = #tpu.dot_dimension_numbers<[1], [0], [0], [1], [0, 0, 1, 1], [], []>} : vector<8x16xf32>, vector<16x128xf32>, vector<8x128xf32> -> vector<8x128xf32>
    %71 = tpu.reciprocal %69 : vector<8x1xf32> -> vector<8x1xf32>
    %72 = vector.broadcast %71 : vector<8x1xf32> to vector<8x128xf32>
    %73 = arith.mulf %70, %72 : vector<8x128xf32>
    %c0_36 = arith.constant 0 : index
    %c0_37 = arith.constant 0 : index
    %74 = vector.load %arg11[%c0_36, %c0_37] : memref<256x128xf32, #tpu.memory_space<vmem>>, vector<128x128xf32>
    %cst_38 = arith.constant dense<0.000000e+00> : vector<8x128xf32>
    %75 = tpu.matmul %73, %74, %cst_38 {dimension_numbers = #tpu.dot_dimension_numbers<[1], [0], [0], [1], [0, 0, 1, 1], [], []>} : vector<8x128xf32>, vector<128x128xf32>, vector<8x128xf32> -> vector<8x128xf32>
    %76 = arith.addf %58, %75 : vector<8x128xf32>
    %77 = vector.extract_strided_slice %53 {offsets = [0, 128], sizes = [8, 128], strides = [1, 1]} : vector<8x256xf32> to vector<8x128xf32>
    %78 = vector.extract_strided_slice %55 {offsets = [0, 128], sizes = [16, 128], strides = [1, 1]} : vector<16x256xf32> to vector<16x128xf32>
    %79 = vector.extract_strided_slice %57 {offsets = [0, 128], sizes = [16, 128], strides = [1, 1]} : vector<16x256xf32> to vector<16x128xf32>
    %cst_39 = arith.constant dense<0.000000e+00> : vector<8x16xf32>
    %80 = tpu.matmul %77, %78, %cst_39 {dimension_numbers = #tpu.dot_dimension_numbers<[1], [1], [0], [0], [0, 0, 1, 0], [], []>} : vector<8x128xf32>, vector<16x128xf32>, vector<8x16xf32> -> vector<8x16xf32>
    %cst_40 = arith.constant dense<0xFF800000> : vector<8xf32>
    %81 = vector.multi_reduction <maximumf>, %80, %cst_40 [1] : vector<8x16xf32> to vector<8xf32>
    %82 = vector.shape_cast %81 : vector<8xf32> to vector<8x1xf32>
    %83 = vector.broadcast %82 : vector<8x1xf32> to vector<8x16xf32>
    %84 = arith.subf %80, %83 : vector<8x16xf32>
    %85 = math.exp %84 : vector<8x16xf32>
    %cst_41 = arith.constant dense<0.000000e+00> : vector<8xf32>
    %86 = vector.multi_reduction <add>, %85, %cst_41 [1] : vector<8x16xf32> to vector<8xf32>
    %87 = vector.shape_cast %86 : vector<8xf32> to vector<8x1xf32>
    %cst_42 = arith.constant dense<0.000000e+00> : vector<8x128xf32>
    %88 = tpu.matmul %85, %79, %cst_42 {dimension_numbers = #tpu.dot_dimension_numbers<[1], [0], [0], [1], [0, 0, 1, 1], [], []>} : vector<8x16xf32>, vector<16x128xf32>, vector<8x128xf32> -> vector<8x128xf32>
    %89 = tpu.reciprocal %87 : vector<8x1xf32> -> vector<8x1xf32>
    %90 = vector.broadcast %89 : vector<8x1xf32> to vector<8x128xf32>
    %91 = arith.mulf %88, %90 : vector<8x128xf32>
    %c128 = arith.constant 128 : index
    %c0_43 = arith.constant 0 : index
    %92 = vector.load %arg11[%c128, %c0_43] : memref<256x128xf32, #tpu.memory_space<vmem>>, vector<128x128xf32>
    %cst_44 = arith.constant dense<0.000000e+00> : vector<8x128xf32>
    %93 = tpu.matmul %91, %92, %cst_44 {dimension_numbers = #tpu.dot_dimension_numbers<[1], [0], [0], [1], [0, 0, 1, 1], [], []>} : vector<8x128xf32>, vector<128x128xf32>, vector<8x128xf32> -> vector<8x128xf32>
    %94 = arith.addf %76, %93 : vector<8x128xf32>
    %c0_45 = arith.constant 0 : index
    %c0_46 = arith.constant 0 : index
    %c0_47 = arith.constant 0 : index
    %95 = vector.load %arg12[%c0_45, %c0_46, %c0_47] : memref<1x8x128xf32, #tpu.memory_space<vmem>>, vector<1x8x128xf32>
    %96 = vector.shape_cast %95 : vector<1x8x128xf32> to vector<8x128xf32>
    %97 = vector.shape_cast %94 : vector<8x128xf32> to vector<1x8x128xf32>
    tpu.vector_store %arg12[%c0_45, %c0_46, %c0_47], %97 {strides = array<i32>} : memref<1x8x128xf32, #tpu.memory_space<vmem>>, vector<1x8x128xf32>,
    return
  }
  func.func @transform_0(%arg0: i32, %arg1: i32) -> (i32, i32, i32) {
    %c0_i32 = arith.constant 0 : i32
    %c0_i32_0 = arith.constant 0 : i32
    %c0_i32_1 = arith.constant 0 : i32
    return %arg0, %c0_i32, %c0_i32_0 : i32, i32, i32
  }
  func.func @transform_1(%arg0: i32, %arg1: i32) -> (i32, i32, i32) {
    %c0_i32 = arith.constant 0 : i32
    %c0_i32_0 = arith.constant 0 : i32
    return %arg0, %arg1, %c0_i32 : i32, i32, i32
  }
  func.func @transform_2(%arg0: i32, %arg1: i32) -> (i32, i32) {
    %c0_i32 = arith.constant 0 : i32
    %c0_i32_0 = arith.constant 0 : i32
    %c0_i32_1 = arith.constant 0 : i32
    return %c0_i32, %c0_i32_0 : i32, i32
  }
  func.func @transform_3(%arg0: i32, %arg1: i32) -> (i32, i32) {
    %c0_i32 = arith.constant 0 : i32
    %c0_i32_0 = arith.constant 0 : i32
    %c0_i32_1 = arith.constant 0 : i32
    return %c0_i32, %c0_i32_0 : i32, i32
  }
  func.func @transform_4(%arg0: i32, %arg1: i32) -> (i32, i32) {
    %c0_i32 = arith.constant 0 : i32
    %c0_i32_0 = arith.constant 0 : i32
    %c0_i32_1 = arith.constant 0 : i32
    return %c0_i32, %c0_i32_0 : i32, i32
  }
  func.func @transform_5(%arg0: i32, %arg1: i32) -> (i32, i32) {
    %c0_i32 = arith.constant 0 : i32
    %c0_i32_0 = arith.constant 0 : i32
    %c0_i32_1 = arith.constant 0 : i32
    return %c0_i32, %c0_i32_0 : i32, i32
  }
  func.func @transform_6(%arg0: i32, %arg1: i32) -> (i32, i32) {
    %c0_i32 = arith.constant 0 : i32
    %c0_i32_0 = arith.constant 0 : i32
    %c0_i32_1 = arith.constant 0 : i32
    return %c0_i32, %c0_i32_0 : i32, i32
  }
  func.func @transform_7(%arg0: i32, %arg1: i32) -> (i32, i32) {
    %c0_i32 = arith.constant 0 : i32
    %c0_i32_0 = arith.constant 0 : i32
    %c0_i32_1 = arith.constant 0 : i32
    return %c0_i32, %c0_i32_0 : i32, i32
  }
  func.func @transform_8(%arg0: i32, %arg1: i32) -> (i32, i32) {
    %c0_i32 = arith.constant 0 : i32
    %c0_i32_0 = arith.constant 0 : i32
    %c0_i32_1 = arith.constant 0 : i32
    return %c0_i32, %c0_i32_0 : i32, i32
  }
  func.func @transform_9(%arg0: i32, %arg1: i32) -> (i32, i32) {
    %c0_i32 = arith.constant 0 : i32
    %c0_i32_0 = arith.constant 0 : i32
    %c0_i32_1 = arith.constant 0 : i32
    return %c0_i32, %c0_i32_0 : i32, i32
  }
  func.func @transform_10(%arg0: i32, %arg1: i32) -> (i32, i32, i32) {
    %c0_i32 = arith.constant 0 : i32
    %c0_i32_0 = arith.constant 0 : i32
    return %arg0, %arg1, %c0_i32 : i32, i32, i32
  }
}

</mosaic_0001>

<llo_original>
// kernel: tpu_custom_call.1
$region0: #{tpu_custom_call.1}
  #allocation0 [shape = 'u32[]', space=smem, size = 0x4, offset = 0x4, fixed_abs, tag = 'smem constant byte address 0x4 - core index']
  #allocation1 [shape = 'u32[144,128]{1,0:T(1,128)}', space=vmem, size = 0x12000, scoped, tag = 'internal scratch']
  %s0 = inlined_call_operand.hbm [shape: f32[2,16,128], index: 0, kind: input, shape index: {}]
  %s1 = inlined_call_operand.hbm [shape: f32[2,8,128], index: 1, kind: input, shape index: {}]
  %s2 = inlined_call_operand.vmem [shape: f32[1,128], index: 2, kind: input, shape index: {}]
  %s3 = inlined_call_operand.vmem [shape: f32[1,128], index: 3, kind: input, shape index: {}]
  %s4 = inlined_call_operand.vmem [shape: f32[1,128], index: 4, kind: input, shape index: {}]
  %s5 = inlined_call_operand.vmem [shape: f32[1,128], index: 5, kind: input, shape index: {}]
  %s6 = inlined_call_operand.hbm [shape: f32[128,256], index: 6, kind: input, shape index: {}]
  %s7 = inlined_call_operand.hbm [shape: f32[128,256], index: 7, kind: input, shape index: {}]
  %s8 = inlined_call_operand.hbm [shape: f32[128,256], index: 8, kind: input, shape index: {}]
  %s9 = inlined_call_operand.hbm [shape: f32[256,128], index: 9, kind: input, shape index: {}]
  %s10 = inlined_call_operand.hbm [shape: f32[2,8,128], index: 10, kind: output, shape index: {}]
  %s11 = sld [smem:[#allocation0]]
  $region97: #{tpu_custom_call.1} parent=0
    _
  %s13 = ssub.s32 1, %s11
  %s14 = scalar_select 0, %s13, %s11
  $region1: #{tpu_custom_call.1} parent=0
    #allocation2 [shape = 'u8[16384]{0}', space=vmem, size = 0x4000, scoped, tag = 'input window, operand 0']
    #allocation3 [shape = 's32[2]{0}', space=sflag, size = 0x8, scoped, tag = 'scoped memory for tpu_custom_call.1']
    #allocation4 [shape = 's32[2]{0}', space=sflag, size = 0x8, scoped, tag = 'scoped memory for tpu_custom_call.1']
    #allocation5 [shape = 'u8[8192]{0}', space=vmem, size = 0x2000, scoped, tag = 'input window, operand 1']
    #allocation6 [shape = 's32[2]{0}', space=sflag, size = 0x8, scoped, tag = 'scoped memory for tpu_custom_call.1']
    #allocation7 [shape = 'u8[131072]{0}', space=vmem, size = 0x20000, scoped, tag = 'input window, operand 6, single buffered']
    #allocation8 [shape = 'u8[131072]{0}', space=vmem, size = 0x20000, scoped, tag = 'input window, operand 7, single buffered']
    #allocation9 [shape = 's32[1]{0}', space=sflag, size = 0x4, scoped, tag = 'scoped memory for tpu_custom_call.1']
    #allocation10 [shape = 'u8[131072]{0}', space=vmem, size = 0x20000, scoped, tag = 'input window, operand 8, single buffered']
    #allocation11 [shape = 'u8[131072]{0}', space=vmem, size = 0x20000, scoped, tag = 'input window, operand 9, single buffered']
    #allocation12 [shape = 's32[1]{0}', space=sflag, size = 0x4, scoped, tag = 'scoped memory for tpu_custom_call.1']
    #allocation13 [shape = 'u8[8192]{0}', space=vmem, size = 0x2000, scoped, tag = 'output window, operand 0']
    %15 = vsyncpa [#allocation3], 0
    %s16 = scalar_lea.sflag [#allocation3], 1
    %17 = vsyncpa %s16, 0
    %18 = vsyncpa [#allocation6], 0
    %s19 = scalar_lea.sflag [#allocation6], 1
    %20 = vsyncpa %s19, 0
    %21 = vsyncpa [#allocation9], 0
    %22 = vsyncpa [#allocation12], 0
    %23 = vsyncpa [#allocation4], 0
    %s24 = scalar_lea.sflag [#allocation4], 1
    %25 = vsyncpa %s24, 0
    loop: start=0, step=1, limit=4
    $region2: #{tpu_custom_call.1} parent=1 // loop_pre_header
      _
    $region3: #{tpu_custom_call.1} parent=1 // loop_header
      %s27 = sphi 0, %s31
      %p28 = scmp.ge.s32.totalorder %s27, 4
      %s34 = sphi 0, %s46
      %s35 = sphi 0, %s42
      %s36 = sphi 0, %s34
      %s37 = sphi 0, %s35
      %s38 = sphi 0, %s36
      %s39 = sphi 0, %s37
      %s49 = sphi 0, %s51
      %s52 = sphi 0, %s49
      %s53 = sphi 0, %s52
      %s69 = sphi 0, %s53
      %s77 = sphi 0, %s79
      %s80 = sphi 0, %s77
      %s81 = sphi 0, %s80
      %s97 = sphi 0, %s81
      %s101 = sphi 0, %s101
      %s103 = sphi 0, %s101
      %s104 = sphi 0, %s103
      %s118 = sphi 0, %s104
      %s122 = sphi 0, %s122
      %s124 = sphi 0, %s122
      %s125 = sphi 0, %s124
      %s139 = sphi 0, %s125
      %s143 = sphi 0, %s143
      %s145 = sphi 0, %s143
      %s146 = sphi 0, %s145
      %s160 = sphi 0, %s146
      %s164 = sphi 0, %s164
      %s166 = sphi 0, %s164
      %s167 = sphi 0, %s166
      %s181 = sphi 0, %s167
      %s185 = sphi 0, %s185
      %s187 = sphi 0, %s185
      %s188 = sphi 0, %s187
      %s202 = sphi 0, %s188
      %s206 = sphi 0, %s206
      %s208 = sphi 0, %s206
      %s209 = sphi 0, %s208
      %s223 = sphi 0, %s209
      %s227 = sphi 0, %s227
      %s229 = sphi 0, %s227
      %s230 = sphi 0, %s229
      %s244 = sphi 0, %s230
      %s248 = sphi 0, %s248
      %s250 = sphi 0, %s248
      %s251 = sphi 0, %s250
      %s265 = sphi 0, %s251
      %s273 = sphi 0, %s275
      %s276 = sphi 0, %s273
      %s277 = sphi 0, %s276
      %s293 = sphi 0, %s277
    $region4: #{tpu_custom_call.1} parent=1 // loop_header_branch
      %30 = sbr.rel (%p28) target = $region8
    $region5: #{tpu_custom_call.1} parent=1 // loop_body
      %s32 = ssub.s32 %s27, 1
      %s33 = ssub.s32 %s27, 2
      %s40 = sadd.s32 1, %s35
      %p41 = scmp.ge.s32.totalorder %s40, 1
      %s42 = scalar_select %p41, 0, %s40
      %s43 = sadd.s32 1, %s34
      %s44 = scalar_select %p41, %s43, %s34
      %p45 = scmp.ge.s32.totalorder %s44, 2
      %s46 = scalar_select %p45, 0, %s44
      %s47 = ssub.s32 %s34, %s46
      %p48 = scmp.eq.s32.totalorder %s47, 0
      %s50 = sadd.s32 %s49, 1
      %s51 = scalar_select %p48, %s49, %s50
      %p54 = pneg %p48
      %p55 = scmp.eq.s32.totalorder %s27, 1
      %p56 = por %p54, %p55
      %p57 = scmp.ne.s32.totalorder %s49, %s52
      %p58 = scmp.eq.s32.totalorder %s27, 0
      %p59 = por %p57, %p58
      %p60 = scmp.ne.s32.totalorder %s49, %s52
      %p61 = scmp.eq.s32.totalorder %s32, 1
      %p62 = por %p60, %p61
      %p63 = scmp.ne.s32.totalorder %s52, %s53
      %p64 = scmp.eq.s32.totalorder %s32, 0
      %p65 = por %p63, %p64
      %p66 = scmp.ne.s32.totalorder %s52, %s53
      %p67 = scmp.eq.s32.totalorder %s33, 1
      %p68 = por %p66, %p67
      %p70 = scmp.ne.s32.totalorder %s53, %s69
      %p71 = scmp.eq.s32.totalorder %s33, 0
      %p72 = por %p70, %p71
      %s73 = ssub.s32 %s34, %s46
      %s74 = ssub.s32 %s35, %s42
      %s75 = sor.u32 %s73, %s74
      %p76 = scmp.eq.s32.totalorder %s75, 0
      %s78 = sadd.s32 %s77, 1
      %s79 = scalar_select %p76, %s77, %s78
      %p82 = pneg %p76
      %p83 = scmp.eq.s32.totalorder %s27, 1
      %p84 = por %p82, %p83
      %p85 = scmp.ne.s32.totalorder %s77, %s80
      %p86 = scmp.eq.s32.totalorder %s27, 0
      %p87 = por %p85, %p86
      %p88 = scmp.ne.s32.totalorder %s77, %s80
      %p89 = scmp.eq.s32.totalorder %s32, 1
      %p90 = por %p88, %p89
      %p91 = scmp.ne.s32.totalorder %s80, %s81
      %p92 = scmp.eq.s32.totalorder %s32, 0
      %p93 = por %p91, %p92
      %p94 = scmp.ne.s32.totalorder %s80, %s81
      %p95 = scmp.eq.s32.totalorder %s33, 1
      %p96 = por %p94, %p95
      %p98 = scmp.ne.s32.totalorder %s81, %s97
      %p99 = scmp.eq.s32.totalorder %s33, 0
      %p100 = por %p98, %p99
      %s102 = sadd.s32 %s101, 1
      %p105 = scmp.eq.s32.totalorder %s27, 1
      %p106 = scmp.ne.s32.totalorder %s101, %s103
      %p107 = scmp.eq.s32.totalorder %s27, 0
      %p108 = por %p106, %p107
      %p109 = scmp.ne.s32.totalorder %s101, %s103
      %p110 = scmp.eq.s32.totalorder %s32, 1
      %p111 = por %p109, %p110
      %p112 = scmp.ne.s32.totalorder %s103, %s104
      %p113 = scmp.eq.s32.totalorder %s32, 0
      %p114 = por %p112, %p113
      %p115 = scmp.ne.s32.totalorder %s103, %s104
      %p116 = scmp.eq.s32.totalorder %s33, 1
      %p117 = por %p115, %p116
      %p119 = scmp.ne.s32.totalorder %s104, %s118
      %p120 = scmp.eq.s32.totalorder %s33, 0
      %p121 = por %p119, %p120
      %s123 = sadd.s32 %s122, 1
      %p126 = scmp.eq.s32.totalorder %s27, 1
      %p127 = scmp.ne.s32.totalorder %s122, %s124
      %p128 = scmp.eq.s32.totalorder %s27, 0
      %p129 = por %p127, %p128
      %p130 = scmp.ne.s32.totalorder %s122, %s124
      %p131 = scmp.eq.s32.totalorder %s32, 1
      %p132 = por %p130, %p131
      %p133 = scmp.ne.s32.totalorder %s124, %s125
      %p134 = scmp.eq.s32.totalorder %s32, 0
      %p135 = por %p133, %p134
      %p136 = scmp.ne.s32.totalorder %s124, %s125
      %p137 = scmp.eq.s32.totalorder %s33, 1
      %p138 = por %p136, %p137
      %p140 = scmp.ne.s32.totalorder %s125, %s139
      %p141 = scmp.eq.s32.totalorder %s33, 0
      %p142 = por %p140, %p141
      %s144 = sadd.s32 %s143, 1
      %p147 = scmp.eq.s32.totalorder %s27, 1
      %p148 = scmp.ne.s32.totalorder %s143, %s145
      %p149 = scmp.eq.s32.totalorder %s27, 0
      %p150 = por %p148, %p149
      %p151 = scmp.ne.s32.totalorder %s143, %s145
      %p152 = scmp.eq.s32.totalorder %s32, 1
      %p153 = por %p151, %p152
      %p154 = scmp.ne.s32.totalorder %s145, %s146
      %p155 = scmp.eq.s32.totalorder %s32, 0
      %p156 = por %p154, %p155
      %p157 = scmp.ne.s32.totalorder %s145, %s146
      %p158 = scmp.eq.s32.totalorder %s33, 1
      %p159 = por %p157, %p158
      %p161 = scmp.ne.s32.totalorder %s146, %s160
      %p162 = scmp.eq.s32.totalorder %s33, 0
      %p163 = por %p161, %p162
      %s165 = sadd.s32 %s164, 1
      %p168 = scmp.eq.s32.totalorder %s27, 1
      %p169 = scmp.ne.s32.totalorder %s164, %s166
      %p170 = scmp.eq.s32.totalorder %s27, 0
      %p171 = por %p169, %p170
      %p172 = scmp.ne.s32.totalorder %s164, %s166
      %p173 = scmp.eq.s32.totalorder %s32, 1
      %p174 = por %p172, %p173
      %p175 = scmp.ne.s32.totalorder %s166, %s167
      %p176 = scmp.eq.s32.totalorder %s32, 0
      %p177 = por %p175, %p176
      %p178 = scmp.ne.s32.totalorder %s166, %s167
      %p179 = scmp.eq.s32.totalorder %s33, 1
      %p180 = por %p178, %p179
      %p182 = scmp.ne.s32.totalorder %s167, %s181
      %p183 = scmp.eq.s32.totalorder %s33, 0
      %p184 = por %p182, %p183
      %s186 = sadd.s32 %s185, 1
      %p189 = scmp.eq.s32.totalorder %s27, 1
      %p190 = scmp.ne.s32.totalorder %s185, %s187
      %p191 = scmp.eq.s32.totalorder %s27, 0
      %p192 = por %p190, %p191
      %p193 = scmp.ne.s32.totalorder %s185, %s187
      %p194 = scmp.eq.s32.totalorder %s32, 1
      %p195 = por %p193, %p194
      %p196 = scmp.ne.s32.totalorder %s187, %s188
      %p197 = scmp.eq.s32.totalorder %s32, 0
      %p198 = por %p196, %p197
      %p199 = scmp.ne.s32.totalorder %s187, %s188
      %p200 = scmp.eq.s32.totalorder %s33, 1
      %p201 = por %p199, %p200
      %p203 = scmp.ne.s32.totalorder %s188, %s202
      %p204 = scmp.eq.s32.totalorder %s33, 0
      %p205 = por %p203, %p204
      %s207 = sadd.s32 %s206, 1
      %p210 = scmp.eq.s32.totalorder %s27, 1
      %p211 = scmp.ne.s32.totalorder %s206, %s208
      %p212 = scmp.eq.s32.totalorder %s27, 0
      %p213 = por %p211, %p212
      %p214 = scmp.ne.s32.totalorder %s206, %s208
      %p215 = scmp.eq.s32.totalorder %s32, 1
      %p216 = por %p214, %p215
      %p217 = scmp.ne.s32.totalorder %s208, %s209
      %p218 = scmp.eq.s32.totalorder %s32, 0
      %p219 = por %p217, %p218
      %p220 = scmp.ne.s32.totalorder %s208, %s209
      %p221 = scmp.eq.s32.totalorder %s33, 1
      %p222 = por %p220, %p221
      %p224 = scmp.ne.s32.totalorder %s209, %s223
      %p225 = scmp.eq.s32.totalorder %s33, 0
      %p226 = por %p224, %p225
      %s228 = sadd.s32 %s227, 1
      %p231 = scmp.eq.s32.totalorder %s27, 1
      %p232 = scmp.ne.s32.totalorder %s227, %s229
      %p233 = scmp.eq.s32.totalorder %s27, 0
      %p234 = por %p232, %p233
      %p235 = scmp.ne.s32.totalorder %s227, %s229
      %p236 = scmp.eq.s32.totalorder %s32, 1
      %p237 = por %p235, %p236
      %p238 = scmp.ne.s32.totalorder %s229, %s230
      %p239 = scmp.eq.s32.totalorder %s32, 0
      %p240 = por %p238, %p239
      %p241 = scmp.ne.s32.totalorder %s229, %s230
      %p242 = scmp.eq.s32.totalorder %s33, 1
      %p243 = por %p241, %p242
      %p245 = scmp.ne.s32.totalorder %s230, %s244
      %p246 = scmp.eq.s32.totalorder %s33, 0
      %p247 = por %p245, %p246
      %s249 = sadd.s32 %s248, 1
      %p252 = scmp.eq.s32.totalorder %s27, 1
      %p253 = scmp.ne.s32.totalorder %s248, %s250
      %p254 = scmp.eq.s32.totalorder %s27, 0
      %p255 = por %p253, %p254
      %p256 = scmp.ne.s32.totalorder %s248, %s250
      %p257 = scmp.eq.s32.totalorder %s32, 1
      %p258 = por %p256, %p257
      %p259 = scmp.ne.s32.totalorder %s250, %s251
      %p260 = scmp.eq.s32.totalorder %s32, 0
      %p261 = por %p259, %p260
      %p262 = scmp.ne.s32.totalorder %s250, %s251
      %p263 = scmp.eq.s32.totalorder %s33, 1
      %p264 = por %p262, %p263
      %p266 = scmp.ne.s32.totalorder %s251, %s265
      %p267 = scmp.eq.s32.totalorder %s33, 0
      %p268 = por %p266, %p267
      %s269 = ssub.s32 %s34, %s46
      %s270 = ssub.s32 %s35, %s42
      %s271 = sor.u32 %s269, %s270
      %p272 = scmp.eq.s32.totalorder %s271, 0
      %s274 = sadd.s32 %s273, 1
      %s275 = scalar_select %p272, %s273, %s274
      %p278 = pneg %p272
      %p279 = scmp.eq.s32.totalorder %s27, 1
      %p280 = por %p278, %p279
      %p281 = scmp.ne.s32.totalorder %s273, %s276
      %p282 = scmp.eq.s32.totalorder %s27, 0
      %p283 = por %p281, %p282
      %p284 = scmp.ne.s32.totalorder %s273, %s276
      %p285 = scmp.eq.s32.totalorder %s32, 1
      %p286 = por %p284, %p285
      %p287 = scmp.ne.s32.totalorder %s276, %s277
      %p288 = scmp.eq.s32.totalorder %s32, 0
      %p289 = por %p287, %p288
      %p290 = scmp.ne.s32.totalorder %s276, %s277
      %p291 = scmp.eq.s32.totalorder %s33, 1
      %p292 = por %p290, %p291
      %p294 = scmp.ne.s32.totalorder %s277, %s293
      %p295 = scmp.eq.s32.totalorder %s33, 0
      %p296 = por %p294, %p295
      %p297 = scmp.le.s32.totalorder 1, %s27
      %p298 = scmp.lt.s32.totalorder %s27, 3
      %p299 = pnand %p297, %p298
      %p300 = pneg %p299
      // Predicated region
      $region9: #{tpu_custom_call.1} parent=5 // pred_check
        _
      $region10: #{tpu_custom_call.1} parent=5 // pred_check_branch
        %302 = sbr.rel (%p299) target = $region12
      $region11: #{tpu_custom_call.1} parent=5 // pred_region
        %s303 = ssub.s32 %s27, 1
        // Predicated region
        $region13: #{tpu_custom_call.1} parent=11 // pred_check
          %p304 = pneg %p114
        $region14: #{tpu_custom_call.1} parent=11 // pred_check_branch
          %306 = sbr.rel (%p304) target = $region16
        $region15: #{tpu_custom_call.1} parent=11 // pred_region
          _
        $region16: #{tpu_custom_call.1} parent=11 // pred_fallthru
          _
        // Predicated region
        $region17: #{tpu_custom_call.1} parent=11 // pred_check
          %p307 = pneg %p135
        $region18: #{tpu_custom_call.1} parent=11 // pred_check_branch
          %309 = sbr.rel (%p307) target = $region20
        $region19: #{tpu_custom_call.1} parent=11 // pred_region
          _
        $region20: #{tpu_custom_call.1} parent=11 // pred_fallthru
          _
        // Predicated region
        $region21: #{tpu_custom_call.1} parent=11 // pred_check
          %p310 = pneg %p156
        $region22: #{tpu_custom_call.1} parent=11 // pred_check_branch
          %312 = sbr.rel (%p310) target = $region24
        $region23: #{tpu_custom_call.1} parent=11 // pred_region
          _
        $region24: #{tpu_custom_call.1} parent=11 // pred_fallthru
          _
        // Predicated region
        $region25: #{tpu_custom_call.1} parent=11 // pred_check
          %p313 = pneg %p177
        $region26: #{tpu_custom_call.1} parent=11 // pred_check_branch
          %315 = sbr.rel (%p313) target = $region28
        $region27: #{tpu_custom_call.1} parent=11 // pred_region
          _
        $region28: #{tpu_custom_call.1} parent=11 // pred_fallthru
          _
        // Predicated region
        $region29: #{tpu_custom_call.1} parent=11 // pred_check
          %p316 = pneg %p198
        $region30: #{tpu_custom_call.1} parent=11 // pred_check_branch
          %318 = sbr.rel (%p316) target = $region32
        $region31: #{tpu_custom_call.1} parent=11 // pred_region
          %s320 = ssub.s32 4096, 4096
          %321 = vsyncadd [#allocation6], %s320
          %s322 = sshll.u32 [#allocation7], 4
          %s323 = int_to_ptr.vmem [resolvable:$true] %s322
          %328 = dma.hbm_to_vmem [thread:$0]  %s6, 4096, %s323, [#allocation6], 256, 256, 16
        $region32: #{tpu_custom_call.1} parent=11 // pred_fallthru
          _
        // Predicated region
        $region33: #{tpu_custom_call.1} parent=11 // pred_check
          %p329 = pneg %p219
        $region34: #{tpu_custom_call.1} parent=11 // pred_check_branch
          %331 = sbr.rel (%p329) target = $region36
        $region35: #{tpu_custom_call.1} parent=11 // pred_region
          %s333 = ssub.s32 4096, 4096
          %334 = vsyncadd [#allocation9], %s333
          %s335 = sshll.u32 [#allocation8], 4
          %s336 = int_to_ptr.vmem [resolvable:$true] %s335
          %341 = dma.hbm_to_vmem [thread:$0]  %s7, 4096, %s336, [#allocation9], 256, 256, 16
        $region36: #{tpu_custom_call.1} parent=11 // pred_fallthru
          _
        // Predicated region
        $region37: #{tpu_custom_call.1} parent=11 // pred_check
          %p342 = pneg %p240
        $region38: #{tpu_custom_call.1} parent=11 // pred_check_branch
          %344 = sbr.rel (%p342) target = $region40
        $region39: #{tpu_custom_call.1} parent=11 // pred_region
          %s346 = ssub.s32 4096, 4096
          %347 = vsyncadd [#allocation9], %s346
          %s348 = sshll.u32 [#allocation10], 4
          %s349 = int_to_ptr.vmem [resolvable:$true] %s348
          %354 = dma.hbm_to_vmem [thread:$0]  %s8, 4096, %s349, [#allocation9], 256, 256, 16
        $region40: #{tpu_custom_call.1} parent=11 // pred_fallthru
          _
        // Predicated region
        $region41: #{tpu_custom_call.1} parent=11 // pred_check
          %p355 = pneg %p261
        $region42: #{tpu_custom_call.1} parent=11 // pred_check_branch
          %357 = sbr.rel (%p355) target = $region44
        $region43: #{tpu_custom_call.1} parent=11 // pred_region
          %s359 = ssub.s32 4096, 4096
          %360 = vsyncadd [#allocation12], %s359
          %s361 = sshll.u32 [#allocation11], 4
          %s362 = int_to_ptr.vmem [resolvable:$true] %s361
          %367 = dma.hbm_to_vmem [thread:$0]  %s9, 4096, %s362, [#allocation12], 128, 128, 8
        $region44: #{tpu_custom_call.1} parent=11 // pred_fallthru
          _
      $region12: #{tpu_custom_call.1} parent=5 // pred_fallthru
        _
      %p368 = scmp.lt.s32.totalorder %s27, 2
      // Predicated region
      $region45: #{tpu_custom_call.1} parent=5 // pred_check
        %p369 = pneg %p368
      $region46: #{tpu_custom_call.1} parent=5 // pred_check_branch
        %371 = sbr.rel (%p369) target = $region48
      $region47: #{tpu_custom_call.1} parent=5 // pred_region
        // Predicated region
        $region49: #{tpu_custom_call.1} parent=47 // pred_check
          %p372 = pneg %p59
        $region50: #{tpu_custom_call.1} parent=47 // pred_check_branch
          %374 = sbr.rel (%p372) target = $region52
        $region51: #{tpu_custom_call.1} parent=47 // pred_region
          %s375 = sand.u32 %s49, 1
          %s376 = scalar_lea.sflag [#allocation3], %s375
          %s377 = sand.u32 %s49, 1
          %s378 = smul.addr %s377, 16
          %s379 = scalar_lea.vmem [#allocation2], %s378
          %s381 = ssub.s32 256, 256
          %382 = vsyncadd %s376, %s381
          %s383 = smul.addr %s34, 2
          %s384 = smul.addr %s383, 128
          %s385 = scalar_lea.hbm %s0, %s384
          %s386 = sshll.u32 %s379, 4
          %s387 = int_to_ptr.vmem [resolvable:$true] %s386
          %392 = dma.hbm_to_vmem [thread:$0]  %s385, 256, %s387, %s376, 128, 128, 8
        $region52: #{tpu_custom_call.1} parent=47 // pred_fallthru
          _
        // Predicated region
        $region53: #{tpu_custom_call.1} parent=47 // pred_check
          %p393 = pneg %p87
        $region54: #{tpu_custom_call.1} parent=47 // pred_check_branch
          %395 = sbr.rel (%p393) target = $region56
        $region55: #{tpu_custom_call.1} parent=47 // pred_region
          %s396 = sand.u32 %s27, 1
          %s397 = scalar_lea.sflag [#allocation6], %s396
          %s398 = sand.u32 %s77, 1
          %s399 = smul.addr %s398, 8
          %s400 = scalar_lea.vmem [#allocation5], %s399
          %s402 = ssub.s32 128, 128
          %403 = vsyncadd %s397, %s402
          %s404 = sadd.s32 %s35, %s34
          %s405 = smul.addr %s404, 128
          %s406 = scalar_lea.hbm %s1, %s405
          %s408 = sshll.u32 %s400, 4
          %s409 = int_to_ptr.vmem [resolvable:$true] %s408
          %411 = dma.hbm_to_vmem [thread:$0]  %s406, 128, %s409, %s397
        $region56: #{tpu_custom_call.1} parent=47 // pred_fallthru
          _
      $region48: #{tpu_custom_call.1} parent=5 // pred_fallthru
        _
      %p412 = scmp.le.s32.totalorder 1, %s27
      %p413 = scmp.lt.s32.totalorder %s27, 3
      %p414 = pnand %p412, %p413
      %p415 = pneg %p414
      // Predicated region
      $region57: #{tpu_custom_call.1} parent=5 // pred_check
        _
      $region58: #{tpu_custom_call.1} parent=5 // pred_check_branch
        %417 = sbr.rel (%p414) target = $region60
      $region59: #{tpu_custom_call.1} parent=5 // pred_region
        %s418 = ssub.s32 %s27, 1
        %s419 = sand.u32 %s52, 1
        %s420 = scalar_lea.sflag [#allocation3], %s419
        %s421 = sand.u32 %s52, 1
        %s422 = smul.addr %s421, 16
        %s423 = scalar_lea.vmem [#allocation2], %s422
        // Predicated region
        $region61: #{tpu_custom_call.1} parent=59 // pred_check
          %p424 = pneg %p65
        $region62: #{tpu_custom_call.1} parent=59 // pred_check_branch
          %426 = sbr.rel (%p424) target = $region64
        $region63: #{tpu_custom_call.1} parent=59 // pred_region
          %427 = dma.done %s420, 256
        $region64: #{tpu_custom_call.1} parent=59 // pred_fallthru
          _
        %s428 = sand.u32 %s32, 1
        %s429 = scalar_lea.sflag [#allocation6], %s428
        %s430 = sand.u32 %s80, 1
        %s431 = smul.addr %s430, 8
        %s432 = scalar_lea.vmem [#allocation5], %s431
        // Predicated region
        $region65: #{tpu_custom_call.1} parent=59 // pred_check
          %p433 = pneg %p93
        $region66: #{tpu_custom_call.1} parent=59 // pred_check_branch
          %435 = sbr.rel (%p433) target = $region68
        $region67: #{tpu_custom_call.1} parent=59 // pred_region
          %436 = dma.done %s429, 128
        $region68: #{tpu_custom_call.1} parent=59 // pred_fallthru
          _
        // Predicated region
        $region69: #{tpu_custom_call.1} parent=59 // pred_check
          %p437 = pneg %p198
        $region70: #{tpu_custom_call.1} parent=59 // pred_check_branch
          %439 = sbr.rel (%p437) target = $region72
        $region71: #{tpu_custom_call.1} parent=59 // pred_region
          %440 = dma.done [#allocation6], 4096
        $region72: #{tpu_custom_call.1} parent=59 // pred_fallthru
          _
        // Predicated region
        $region73: #{tpu_custom_call.1} parent=59 // pred_check
          %p441 = pneg %p219
        $region74: #{tpu_custom_call.1} parent=59 // pred_check_branch
          %443 = sbr.rel (%p441) target = $region76
        $region75: #{tpu_custom_call.1} parent=59 // pred_region
          %444 = dma.done [#allocation9], 4096
        $region76: #{tpu_custom_call.1} parent=59 // pred_fallthru
          _
        // Predicated region
        $region77: #{tpu_custom_call.1} parent=59 // pred_check
          %p445 = pneg %p240
        $region78: #{tpu_custom_call.1} parent=59 // pred_check_branch
          %447 = sbr.rel (%p445) target = $region80
        $region79: #{tpu_custom_call.1} parent=59 // pred_region
          %448 = dma.done [#allocation9], 4096
        $region80: #{tpu_custom_call.1} parent=59 // pred_fallthru
          _
        // Predicated region
        $region81: #{tpu_custom_call.1} parent=59 // pred_check
          %p449 = pneg %p261
        $region82: #{tpu_custom_call.1} parent=59 // pred_check_branch
          %451 = sbr.rel (%p449) target = $region84
        $region83: #{tpu_custom_call.1} parent=59 // pred_region
          %452 = dma.done [#allocation12], 4096
        $region84: #{tpu_custom_call.1} parent=59 // pred_fallthru
          _
        %s453 = sand.u32 %s52, 1
        %s454 = scalar_lea.sflag [#allocation3], %s453
        %s455 = sand.u32 %s52, 1
        %s456 = smul.addr %s455, 16
        %s457 = scalar_lea.vmem [#allocation2], %s456
        %p458 = pneg %p65
        %p459 = pneg %p62
        %s460 = sand.u32 %s32, 1
        %s461 = scalar_lea.sflag [#allocation6], %s460
        %s462 = sand.u32 %s80, 1
        %s463 = smul.addr %s462, 8
        %s464 = scalar_lea.vmem [#allocation5], %s463
        %p465 = pneg %p93
        %p466 = pneg %p90
        %p467 = pneg %p114
        %p468 = pneg %p111
        %p469 = pneg %p135
        %p470 = pneg %p132
        %p471 = pneg %p156
        %p472 = pneg %p153
        %p473 = pneg %p177
        %p474 = pneg %p174
        %p475 = pneg %p198
        %p476 = pneg %p195
        %p477 = pneg %p219
        %p478 = pneg %p216
        %p479 = pneg %p240
        %p480 = pneg %p237
        %p481 = pneg %p261
        %p482 = pneg %p258
        %p483 = pneg %p289
        %p484 = pneg %p286
        %s485 = sand.u32 %s276, 1
        %s486 = scalar_lea.sflag [#allocation4], %s485
        %s487 = sand.u32 %s276, 1
        %s488 = smul.addr %s487, 8
        %s489 = scalar_lea.vmem [#allocation13], %s488
        %v490 = vld [vmem:[%s423] sm:$0xff]
        %v491 = vld [vmem:[%s423 + $0x8] sm:$0xff]
        %v492 = vld [vmem:[%s432] sm:$0xff]
        %v493 = vld [vmem:[%s2] sm:$0x1]
        %v494 = vld [vmem:[%s3] sm:$0x1]
        %495 = vadd.xlane.f32.xlu0 %v490
        %v496 = vpop.xlane.xlu0 %495
        %497 = vadd.xlane.f32.xlu0 %v491
        %v498 = vpop.xlane.xlu0 %497
        %v499 = vrcp.pop 128.0
        %v500 = vmul.f32 %v496, %v499
        %v501 = vmul.f32 %v498, %v499
        %v502 = vsub.f32 %v490, %v500
        %v503 = vsub.f32 %v491, %v501
        %v504 = vmul.f32 %v502, %v502
        %v505 = vmul.f32 %v503, %v503
        %506 = vadd.xlane.f32.xlu0 %v504
        %v507 = vpop.xlane.xlu0 %506
        %508 = vadd.xlane.f32.xlu0 %v505
        %v509 = vpop.xlane.xlu0 %508
        %v510 = vmul.f32 %v507, %v499
        %v511 = vmul.f32 %v509, %v499
        %v512 = vadd.f32 %v510, 1e-05
        %v513 = vadd.f32 %v511, 1e-05
        %v514 = vrsqrt.pop %v512
        %v515 = vrsqrt.pop %v513
        %v516 = vmul.f32 %v502, %v514
        %v517 = vmul.f32 %v503, %v515
        %v519 = vlaneseq
        %v520 = vshrl.u32 %v519, 7
        %v521 = vsub.s32 0, %v520
        %v522 = vrot.slane %v493, %v521
        %v524 = vmul.f32 %v516, %v522
        %v525 = vmul.f32 %v517, %v522
        %v527 = vlaneseq
        %v528 = vshrl.u32 %v527, 7
        %v529 = vsub.s32 0, %v528
        %v530 = vrot.slane %v494, %v529
        %v532 = vadd.f32 %v524, %v530
        %v533 = vadd.f32 %v525, %v530
        %v534 = vld [vmem:[%s4] sm:$0x1]
        %v535 = vld [vmem:[%s5] sm:$0x1]
        %536 = vadd.xlane.f32.xlu0 %v492
        %v537 = vpop.xlane.xlu0 %536
        %v538 = vmul.f32 %v537, %v499
        %v539 = vsub.f32 %v492, %v538
        %v540 = vmul.f32 %v539, %v539
        %541 = vadd.xlane.f32.xlu0 %v540
        %v542 = vpop.xlane.xlu0 %541
        %v543 = vmul.f32 %v542, %v499
        %v544 = vadd.f32 %v543, 1e-05
        %v545 = vrsqrt.pop %v544
        %v546 = vmul.f32 %v539, %v545
        %v548 = vlaneseq
        %v549 = vshrl.u32 %v548, 7
        %v550 = vsub.s32 0, %v549
        %v551 = vrot.slane %v534, %v550
        %v553 = vmul.f32 %v546, %v551
        %v555 = vlaneseq
        %v556 = vshrl.u32 %v555, 7
        %v557 = vsub.s32 0, %v556
        %v558 = vrot.slane %v535, %v557
        %v560 = vadd.f32 %v553, %v558
        %v561 = vld [vmem:[#allocation7] sm:$0xff]
        %v562 = vld [vmem:[#allocation7 + $0x8] sm:$0xff]
        %v563 = vld [vmem:[#allocation7 + $0x10] sm:$0xff]
        %v564 = vld [vmem:[#allocation7 + $0x18] sm:$0xff]
        %v565 = vld [vmem:[#allocation7 + $0x20] sm:$0xff]
        %v566 = vld [vmem:[#allocation7 + $0x28] sm:$0xff]
        %v567 = vld [vmem:[#allocation7 + $0x30] sm:$0xff]
        %v568 = vld [vmem:[#allocation7 + $0x38] sm:$0xff]
        %v569 = vld [vmem:[#allocation7 + $0x40] sm:$0xff]
        %v570 = vld [vmem:[#allocation7 + $0x48] sm:$0xff]
        %v571 = vld [vmem:[#allocation7 + $0x50] sm:$0xff]
        %v572 = vld [vmem:[#allocation7 + $0x58] sm:$0xff]
        %v573 = vld [vmem:[#allocation7 + $0x60] sm:$0xff]
        %v574 = vld [vmem:[#allocation7 + $0x68] sm:$0xff]
        %v575 = vld [vmem:[#allocation7 + $0x70] sm:$0xff]
        %v576 = vld [vmem:[#allocation7 + $0x78] sm:$0xff]
        %v577 = vld [vmem:[#allocation7 + $0x80] sm:$0xff]
        %v578 = vld [vmem:[#allocation7 + $0x88] sm:$0xff]
        %v579 = vld [vmem:[#allocation7 + $0x90] sm:$0xff]
        %v580 = vld [vmem:[#allocation7 + $0x98] sm:$0xff]
        %v581 = vld [vmem:[#allocation7 + $0xa0] sm:$0xff]
        %v582 = vld [vmem:[#allocation7 + $0xa8] sm:$0xff]
        %v583 = vld [vmem:[#allocation7 + $0xb0] sm:$0xff]
        %v584 = vld [vmem:[#allocation7 + $0xb8] sm:$0xff]
        %v585 = vld [vmem:[#allocation7 + $0xc0] sm:$0xff]
        %v586 = vld [vmem:[#allocation7 + $0xc8] sm:$0xff]
        %v587 = vld [vmem:[#allocation7 + $0xd0] sm:$0xff]
        %v588 = vld [vmem:[#allocation7 + $0xd8] sm:$0xff]
        %v589 = vld [vmem:[#allocation7 + $0xe0] sm:$0xff]
        %v590 = vld [vmem:[#allocation7 + $0xe8] sm:$0xff]
        %v591 = vld [vmem:[#allocation7 + $0xf0] sm:$0xff]
        %v592 = vld [vmem:[#allocation7 + $0xf8] sm:$0xff]
        %593 = vmatprep.subr.mxu0 %v592
        %594 = vmatpush1.msra.mxu0 %v591
        %595 = vmatprep.subr.mxu0 %v590
        %596 = vmatpush1.msra.mxu0 %v589
        %597 = vmatprep.subr.mxu0 %v588
        %598 = vmatpush1.msra.mxu0 %v587
        %599 = vmatprep.subr.mxu0 %v586
        %600 = vmatpush1.msra.mxu0 %v585
        %601 = vmatprep.subr.mxu0 %v584
        %602 = vmatpush1.msra.mxu0 %v583
        %603 = vmatprep.subr.mxu0 %v582
        %604 = vmatpush1.msra.mxu0 %v581
        %605 = vmatprep.subr.mxu0 %v580
        %606 = vmatpush1.msra.mxu0 %v579
        %607 = vmatprep.subr.mxu0 %v578
        %608 = vmatpush1.msra.mxu0 %v577
        %609 = vmatprep.subr.mxu0 %v576
        %610 = vmatpush1.msra.mxu0 %v575
        %611 = vmatprep.subr.mxu0 %v574
        %612 = vmatpush1.msra.mxu0 %v573
        %613 = vmatprep.subr.mxu0 %v572
        %614 = vmatpush1.msra.mxu0 %v571
        %615 = vmatprep.subr.mxu0 %v570
        %616 = vmatpush1.msra.mxu0 %v569
        %617 = vmatprep.subr.mxu0 %v568
        %618 = vmatpush1.msra.mxu0 %v567
        %619 = vmatprep.subr.mxu0 %v566
        %620 = vmatpush1.msra.mxu0 %v565
        %621 = vmatprep.subr.mxu0 %v564
        %622 = vmatpush1.msra.mxu0 %v563
        %623 = vmatprep.subr.mxu0 %v562
        %624 = vmatpush1.msra.mxu0 %v561
        %625 = vmatprep.subr.mxu0 0.0
        %626 = vmatpush2.msra.mxu0 0.0
        %627 = vmatprep.subr.mxu0 0.0
        %628 = vmatpush2.msra.mxu0 0.0
        %629 = vmatprep.subr.mxu0 0.0
        %630 = vmatpush2.msra.mxu0 0.0
        %631 = vmatprep.subr.mxu0 0.0
        %632 = vmatpush2.msra.mxu0 0.0
        %633 = vmatprep.subr.mxu0 0.0
        %634 = vmatpush2.msra.mxu0 0.0
        %635 = vmatprep.subr.mxu0 0.0
        %636 = vmatpush2.msra.mxu0 0.0
        %637 = vmatprep.subr.mxu0 0.0
        %638 = vmatpush2.msra.mxu0 0.0
        %639 = vmatprep.subr.mxu0 0.0
        %640 = vmatpush2.msra.mxu0 0.0
        %641 = vmatprep.subr.mxu0 0.0
        %642 = vmatpush2.msra.mxu0 0.0
        %643 = vmatprep.subr.mxu0 0.0
        %644 = vmatpush2.msra.mxu0 0.0
        %645 = vmatprep.subr.mxu0 0.0
        %646 = vmatpush2.msra.mxu0 0.0
        %647 = vmatprep.subr.mxu0 0.0
        %648 = vmatpush2.msra.mxu0 0.0
        %649 = vmatprep.subr.mxu0 0.0
        %650 = vmatpush2.msra.mxu0 0.0
        %651 = vmatprep.subr.mxu0 0.0
        %652 = vmatpush2.msra.mxu0 0.0
        %653 = vmatprep.subr.mxu0 0.0
        %654 = vmatpush2.msra.mxu0 0.0
        %655 = vmatprep.subr.mxu0 0.0
        %656 = vmatpush2.msra.mxu0 0.0
        %657 = vmatprep.mubr.f32.mxu0 0.0
        %658 = vmatmul.mubr.f32.gmra.mxu0 %v560
        %v659 = vpop.f32.mrf.mxu0
        %v660 = vadd.f32 0.0, %v659
        %v661 = vpop.f32.mrf.mxu0
        %v662 = vadd.f32 0.0, %v661
        %663 = vdwg.mxu0
        %v664 = vld [vmem:[#allocation8] sm:$0xff]
        %v665 = vld [vmem:[#allocation8 + $0x8] sm:$0xff]
        %v666 = vld [vmem:[#allocation8 + $0x10] sm:$0xff]
        %v667 = vld [vmem:[#allocation8 + $0x18] sm:$0xff]
        %v668 = vld [vmem:[#allocation8 + $0x20] sm:$0xff]
        %v669 = vld [vmem:[#allocation8 + $0x28] sm:$0xff]
        %v670 = vld [vmem:[#allocation8 + $0x30] sm:$0xff]
        %v671 = vld [vmem:[#allocation8 + $0x38] sm:$0xff]
        %v672 = vld [vmem:[#allocation8 + $0x40] sm:$0xff]
        %v673 = vld [vmem:[#allocation8 + $0x48] sm:$0xff]
        %v674 = vld [vmem:[#allocation8 + $0x50] sm:$0xff]
        %v675 = vld [vmem:[#allocation8 + $0x58] sm:$0xff]
        %v676 = vld [vmem:[#allocation8 + $0x60] sm:$0xff]
        %v677 = vld [vmem:[#allocation8 + $0x68] sm:$0xff]
        %v678 = vld [vmem:[#allocation8 + $0x70] sm:$0xff]
        %v679 = vld [vmem:[#allocation8 + $0x78] sm:$0xff]
        %v680 = vld [vmem:[#allocation8 + $0x80] sm:$0xff]
        %v681 = vld [vmem:[#allocation8 + $0x88] sm:$0xff]
        %v682 = vld [vmem:[#allocation8 + $0x90] sm:$0xff]
        %v683 = vld [vmem:[#allocation8 + $0x98] sm:$0xff]
        %v684 = vld [vmem:[#allocation8 + $0xa0] sm:$0xff]
        %v685 = vld [vmem:[#allocation8 + $0xa8] sm:$0xff]
        %v686 = vld [vmem:[#allocation8 + $0xb0] sm:$0xff]
        %v687 = vld [vmem:[#allocation8 + $0xb8] sm:$0xff]
        %v688 = vld [vmem:[#allocation8 + $0xc0] sm:$0xff]
        %v689 = vld [vmem:[#allocation8 + $0xc8] sm:$0xff]
        %v690 = vld [vmem:[#allocation8 + $0xd0] sm:$0xff]
        %v691 = vld [vmem:[#allocation8 + $0xd8] sm:$0xff]
        %v692 = vld [vmem:[#allocation8 + $0xe0] sm:$0xff]
        %v693 = vld [vmem:[#allocation8 + $0xe8] sm:$0xff]
        %v694 = vld [vmem:[#allocation8 + $0xf0] sm:$0xff]
        %v695 = vld [vmem:[#allocation8 + $0xf8] sm:$0xff]
        %696 = vmatprep.subr.mxu0 %v695
        %697 = vmatpush1.msra.mxu0 %v694
        %698 = vmatprep.subr.mxu0 %v693
        %699 = vmatpush1.msra.mxu0 %v692
        %700 = vmatprep.subr.mxu0 %v691
        %701 = vmatpush1.msra.mxu0 %v690
        %702 = vmatprep.subr.mxu0 %v689
        %703 = vmatpush1.msra.mxu0 %v688
        %704 = vmatprep.subr.mxu0 %v687
        %705 = vmatpush1.msra.mxu0 %v686
        %706 = vmatprep.subr.mxu0 %v685
        %707 = vmatpush1.msra.mxu0 %v684
        %708 = vmatprep.subr.mxu0 %v683
        %709 = vmatpush1.msra.mxu0 %v682
        %710 = vmatprep.subr.mxu0 %v681
        %711 = vmatpush1.msra.mxu0 %v680
        %712 = vmatprep.subr.mxu0 %v679
        %713 = vmatpush1.msra.mxu0 %v678
        %714 = vmatprep.subr.mxu0 %v677
        %715 = vmatpush1.msra.mxu0 %v676
        %716 = vmatprep.subr.mxu0 %v675
        %717 = vmatpush1.msra.mxu0 %v674
        %718 = vmatprep.subr.mxu0 %v673
        %719 = vmatpush1.msra.mxu0 %v672
        %720 = vmatprep.subr.mxu0 %v671
        %721 = vmatpush1.msra.mxu0 %v670
        %722 = vmatprep.subr.mxu0 %v669
        %723 = vmatpush1.msra.mxu0 %v668
        %724 = vmatprep.subr.mxu0 %v667
        %725 = vmatpush1.msra.mxu0 %v666
        %726 = vmatprep.subr.mxu0 %v665
        %727 = vmatpush1.msra.mxu0 %v664
        %728 = vmatprep.subr.mxu0 0.0
        %729 = vmatpush2.msra.mxu0 0.0
        %730 = vmatprep.subr.mxu0 0.0
        %731 = vmatpush2.msra.mxu0 0.0
        %732 = vmatprep.subr.mxu0 0.0
        %733 = vmatpush2.msra.mxu0 0.0
        %734 = vmatprep.subr.mxu0 0.0
        %735 = vmatpush2.msra.mxu0 0.0
        %736 = vmatprep.subr.mxu0 0.0
        %737 = vmatpush2.msra.mxu0 0.0
        %738 = vmatprep.subr.mxu0 0.0
        %739 = vmatpush2.msra.mxu0 0.0
        %740 = vmatprep.subr.mxu0 0.0
        %741 = vmatpush2.msra.mxu0 0.0
        %742 = vmatprep.subr.mxu0 0.0
        %743 = vmatpush2.msra.mxu0 0.0
        %744 = vmatprep.subr.mxu0 0.0
        %745 = vmatpush2.msra.mxu0 0.0
        %746 = vmatprep.subr.mxu0 0.0
        %747 = vmatpush2.msra.mxu0 0.0
        %748 = vmatprep.subr.mxu0 0.0
        %749 = vmatpush2.msra.mxu0 0.0
        %750 = vmatprep.subr.mxu0 0.0
        %751 = vmatpush2.msra.mxu0 0.0
        %752 = vmatprep.subr.mxu0 0.0
        %753 = vmatpush2.msra.mxu0 0.0
        %754 = vmatprep.subr.mxu0 0.0
        %755 = vmatpush2.msra.mxu0 0.0
        %756 = vmatprep.subr.mxu0 0.0
        %757 = vmatpush2.msra.mxu0 0.0
        %758 = vmatprep.subr.mxu0 0.0
        %759 = vmatpush2.msra.mxu0 0.0
        %760 = vmatprep.mubr.f32.mxu0 0.0
        %761 = vmatmul.mubr.f32.gmra.mxu0 %v532
        %v762 = vpop.f32.mrf.mxu0
        %v763 = vadd.f32 0.0, %v762
        %v764 = vpop.f32.mrf.mxu0
        %v765 = vadd.f32 0.0, %v764
        %766 = vmatprep.mubr.f32.mxu0 0.0
        %767 = vmatmul.mubr.f32.gmra.mxu0 %v533
        %v768 = vpop.f32.mrf.mxu0
        %v769 = vadd.f32 0.0, %v768
        %v770 = vpop.f32.mrf.mxu0
        %v771 = vadd.f32 0.0, %v770
        %772 = vdwg.mxu0
        %v773 = vld [vmem:[#allocation10] sm:$0xff]
        %v774 = vld [vmem:[#allocation10 + $0x8] sm:$0xff]
        %v775 = vld [vmem:[#allocation10 + $0x10] sm:$0xff]
        %v776 = vld [vmem:[#allocation10 + $0x18] sm:$0xff]
        %v777 = vld [vmem:[#allocation10 + $0x20] sm:$0xff]
        %v778 = vld [vmem:[#allocation10 + $0x28] sm:$0xff]
        %v779 = vld [vmem:[#allocation10 + $0x30] sm:$0xff]
        %v780 = vld [vmem:[#allocation10 + $0x38] sm:$0xff]
        %v781 = vld [vmem:[#allocation10 + $0x40] sm:$0xff]
        %v782 = vld [vmem:[#allocation10 + $0x48] sm:$0xff]
        %v783 = vld [vmem:[#allocation10 + $0x50] sm:$0xff]
        %v784 = vld [vmem:[#allocation10 + $0x58] sm:$0xff]
        %v785 = vld [vmem:[#allocation10 + $0x60] sm:$0xff]
        %v786 = vld [vmem:[#allocation10 + $0x68] sm:$0xff]
        %v787 = vld [vmem:[#allocation10 + $0x70] sm:$0xff]
        %v788 = vld [vmem:[#allocation10 + $0x78] sm:$0xff]
        %v789 = vld [vmem:[#allocation10 + $0x80] sm:$0xff]
        %v790 = vld [vmem:[#allocation10 + $0x88] sm:$0xff]
        %v791 = vld [vmem:[#allocation10 + $0x90] sm:$0xff]
        %v792 = vld [vmem:[#allocation10 + $0x98] sm:$0xff]
        %v793 = vld [vmem:[#allocation10 + $0xa0] sm:$0xff]
        %v794 = vld [vmem:[#allocation10 + $0xa8] sm:$0xff]
        %v795 = vld [vmem:[#allocation10 + $0xb0] sm:$0xff]
        %v796 = vld [vmem:[#allocation10 + $0xb8] sm:$0xff]
        %v797 = vld [vmem:[#allocation10 + $0xc0] sm:$0xff]
        %v798 = vld [vmem:[#allocation10 + $0xc8] sm:$0xff]
        %v799 = vld [vmem:[#allocation10 + $0xd0] sm:$0xff]
        %v800 = vld [vmem:[#allocation10 + $0xd8] sm:$0xff]
        %v801 = vld [vmem:[#allocation10 + $0xe0] sm:$0xff]
        %v802 = vld [vmem:[#allocation10 + $0xe8] sm:$0xff]
        %v803 = vld [vmem:[#allocation10 + $0xf0] sm:$0xff]
        %v804 = vld [vmem:[#allocation10 + $0xf8] sm:$0xff]
        %805 = vmatprep.subr.mxu0 %v804
        %806 = vmatpush1.msra.mxu0 %v803
        %807 = vmatprep.subr.mxu0 %v802
        %808 = vmatpush1.msra.mxu0 %v801
        %809 = vmatprep.subr.mxu0 %v800
        %810 = vmatpush1.msra.mxu0 %v799
        %811 = vmatprep.subr.mxu0 %v798
        %812 = vmatpush1.msra.mxu0 %v797
        %813 = vmatprep.subr.mxu0 %v796
        %814 = vmatpush1.msra.mxu0 %v795
        %815 = vmatprep.subr.mxu0 %v794
        %816 = vmatpush1.msra.mxu0 %v793
        %817 = vmatprep.subr.mxu0 %v792
        %818 = vmatpush1.msra.mxu0 %v791
        %819 = vmatprep.subr.mxu0 %v790
        %820 = vmatpush1.msra.mxu0 %v789
        %821 = vmatprep.subr.mxu0 %v788
        %822 = vmatpush1.msra.mxu0 %v787
        %823 = vmatprep.subr.mxu0 %v786
        %824 = vmatpush1.msra.mxu0 %v785
        %825 = vmatprep.subr.mxu0 %v784
        %826 = vmatpush1.msra.mxu0 %v783
        %827 = vmatprep.subr.mxu0 %v782
        %828 = vmatpush1.msra.mxu0 %v781
        %829 = vmatprep.subr.mxu0 %v780
        %830 = vmatpush1.msra.mxu0 %v779
        %831 = vmatprep.subr.mxu0 %v778
        %832 = vmatpush1.msra.mxu0 %v777
        %833 = vmatprep.subr.mxu0 %v776
        %834 = vmatpush1.msra.mxu0 %v775
        %835 = vmatprep.subr.mxu0 %v774
        %836 = vmatpush1.msra.mxu0 %v773
        %837 = vmatprep.subr.mxu0 0.0
        %838 = vmatpush2.msra.mxu0 0.0
        %839 = vmatprep.subr.mxu0 0.0
        %840 = vmatpush2.msra.mxu0 0.0
        %841 = vmatprep.subr.mxu0 0.0
        %842 = vmatpush2.msra.mxu0 0.0
        %843 = vmatprep.subr.mxu0 0.0
        %844 = vmatpush2.msra.mxu0 0.0
        %845 = vmatprep.subr.mxu0 0.0
        %846 = vmatpush2.msra.mxu0 0.0
        %847 = vmatprep.subr.mxu0 0.0
        %848 = vmatpush2.msra.mxu0 0.0
        %849 = vmatprep.subr.mxu0 0.0
        %850 = vmatpush2.msra.mxu0 0.0
        %851 = vmatprep.subr.mxu0 0.0
        %852 = vmatpush2.msra.mxu0 0.0
        %853 = vmatprep.subr.mxu0 0.0
        %854 = vmatpush2.msra.mxu0 0.0
        %855 = vmatprep.subr.mxu0 0.0
        %856 = vmatpush2.msra.mxu0 0.0
        %857 = vmatprep.subr.mxu0 0.0
        %858 = vmatpush2.msra.mxu0 0.0
        %859 = vmatprep.subr.mxu0 0.0
        %860 = vmatpush2.msra.mxu0 0.0
        %861 = vmatprep.subr.mxu0 0.0
        %862 = vmatpush2.msra.mxu0 0.0
        %863 = vmatprep.subr.mxu0 0.0
        %864 = vmatpush2.msra.mxu0 0.0
        %865 = vmatprep.subr.mxu0 0.0
        %866 = vmatpush2.msra.mxu0 0.0
        %867 = vmatprep.subr.mxu0 0.0
        %868 = vmatpush2.msra.mxu0 0.0
        %869 = vmatprep.mubr.f32.mxu0 0.0
        %870 = vmatmul.mubr.f32.gmra.mxu0 %v532
        %v871 = vpop.f32.mrf.mxu0
        %v872 = vadd.f32 0.0, %v871
        %v873 = vpop.f32.mrf.mxu0
        %v874 = vadd.f32 0.0, %v873
        %875 = vmatprep.mubr.f32.mxu0 0.0
        %876 = vmatmul.mubr.f32.gmra.mxu0 %v533
        %v877 = vpop.f32.mrf.mxu0
        %v878 = vadd.f32 0.0, %v877
        %v879 = vpop.f32.mrf.mxu0
        %v880 = vadd.f32 0.0, %v879
        %881 = vdwg.mxu0
        %882 = vmatprep.subr.mxu0 0.0
        %883 = vmatpush1.xpose.msra.mxu0 0.0
        %884 = vmatprep.subr.mxu0 0.0
        %885 = vmatpush1.xpose.msra.mxu0 0.0
        %886 = vmatprep.subr.mxu0 0.0
        %887 = vmatpush1.xpose.msra.mxu0 0.0
        %888 = vmatprep.subr.mxu0 0.0
        %889 = vmatpush1.xpose.msra.mxu0 0.0
        %890 = vmatprep.subr.mxu0 0.0
        %891 = vmatpush1.xpose.msra.mxu0 0.0
        %892 = vmatprep.subr.mxu0 0.0
        %893 = vmatpush1.xpose.msra.mxu0 0.0
        %894 = vmatprep.subr.mxu0 0.0
        %895 = vmatpush1.xpose.msra.mxu0 0.0
        %896 = vmatprep.subr.mxu0 0.0
        %897 = vmatpush1.xpose.msra.mxu0 0.0
        %898 = vmatprep.subr.mxu0 0.0
        %899 = vmatpush1.xpose.msra.mxu0 0.0
        %900 = vmatprep.subr.mxu0 0.0
        %901 = vmatpush1.xpose.msra.mxu0 0.0
        %902 = vmatprep.subr.mxu0 0.0
        %903 = vmatpush1.xpose.msra.mxu0 0.0
        %904 = vmatprep.subr.mxu0 0.0
        %905 = vmatpush1.xpose.msra.mxu0 0.0
        %906 = vmatprep.subr.mxu0 0.0
        %907 = vmatpush1.xpose.msra.mxu0 0.0
        %908 = vmatprep.subr.mxu0 0.0
        %909 = vmatpush1.xpose.msra.mxu0 0.0
        %910 = vmatprep.subr.mxu0 0.0
        %911 = vmatpush1.xpose.msra.mxu0 %v769
        %912 = vmatprep.subr.mxu0 0.0
        %913 = vmatpush1.xpose.msra.mxu0 %v763
        %914 = vmatprep.subr.mxu0 0.0
        %915 = vmatpush2.xpose.msra.mxu0 0.0
        %916 = vmatprep.subr.mxu0 0.0
        %917 = vmatpush2.xpose.msra.mxu0 0.0
        %918 = vmatprep.subr.mxu0 0.0
        %919 = vmatpush2.xpose.msra.mxu0 0.0
        %920 = vmatprep.subr.mxu0 0.0
        %921 = vmatpush2.xpose.msra.mxu0 0.0
        %922 = vmatprep.subr.mxu0 0.0
        %923 = vmatpush2.xpose.msra.mxu0 0.0
        %924 = vmatprep.subr.mxu0 0.0
        %925 = vmatpush2.xpose.msra.mxu0 0.0
        %926 = vmatprep.subr.mxu0 0.0
        %927 = vmatpush2.xpose.msra.mxu0 0.0
        %928 = vmatprep.subr.mxu0 0.0
        %929 = vmatpush2.xpose.msra.mxu0 0.0
        %930 = vmatprep.subr.mxu0 0.0
        %931 = vmatpush2.xpose.msra.mxu0 0.0
        %932 = vmatprep.subr.mxu0 0.0
        %933 = vmatpush2.xpose.msra.mxu0 0.0
        %934 = vmatprep.subr.mxu0 0.0
        %935 = vmatpush2.xpose.msra.mxu0 0.0
        %936 = vmatprep.subr.mxu0 0.0
        %937 = vmatpush2.xpose.msra.mxu0 0.0
        %938 = vmatprep.subr.mxu0 0.0
        %939 = vmatpush2.xpose.msra.mxu0 0.0
        %940 = vmatprep.subr.mxu0 0.0
        %941 = vmatpush2.xpose.msra.mxu0 0.0
        %942 = vmatprep.subr.mxu0 0.0
        %943 = vmatpush2.xpose.msra.mxu0 0.0
        %944 = vmatprep.subr.mxu0 0.0
        %945 = vmatpush2.xpose.msra.mxu0 0.0
        %946 = vmatprep.mubr.f32.mxu0 0.0
        %947 = vmatmul.mubr.f32.gmra.mxu0 %v660
        %v948 = vpop.f32.mrf.mxu0
        %v949 = vadd.f32 0.0, %v948
        %v950 = vpop.f32.mrf.mxu0
        %951 = vdwg.mxu0
        %vm952 = vcmask 130048
        %v953 = vsel %vm952, %v949, -inf
        %954 = vmax.xlane.f32.xlu0 %v953
        %v955 = vpop.xlane.xlu0 %954
        %v956 = vsub.f32 %v949, %v955
        %v957 = vmul.f32 %v956, 1.442695
        %v958 = vpow.pop %v957
        %v959 = vsel %vm952, %v958, 0.0
        %960 = vadd.xlane.f32.xlu0 %v959
        %v961 = vpop.xlane.xlu0 %960
        %v963 = vsel %vm952, %v958, 0
        %965 = vmatprep.subr.mxu0 0.0
        %966 = vmatpush1.msra.mxu0 0.0
        %967 = vmatprep.subr.mxu0 0.0
        %968 = vmatpush1.msra.mxu0 0.0
        %969 = vmatprep.subr.mxu0 0.0
        %970 = vmatpush1.msra.mxu0 0.0
        %971 = vmatprep.subr.mxu0 0.0
        %972 = vmatpush1.msra.mxu0 0.0
        %973 = vmatprep.subr.mxu0 0.0
        %974 = vmatpush1.msra.mxu0 0.0
        %975 = vmatprep.subr.mxu0 0.0
        %976 = vmatpush1.msra.mxu0 0.0
        %977 = vmatprep.subr.mxu0 0.0
        %978 = vmatpush1.msra.mxu0 0.0
        %979 = vmatprep.subr.mxu0 0.0
        %980 = vmatpush1.msra.mxu0 0.0
        %981 = vmatprep.subr.mxu0 0.0
        %982 = vmatpush1.msra.mxu0 0.0
        %983 = vmatprep.subr.mxu0 0.0
        %984 = vmatpush1.msra.mxu0 0.0
        %985 = vmatprep.subr.mxu0 0.0
        %986 = vmatpush1.msra.mxu0 0.0
        %987 = vmatprep.subr.mxu0 0.0
        %988 = vmatpush1.msra.mxu0 0.0
        %989 = vmatprep.subr.mxu0 0.0
        %990 = vmatpush1.msra.mxu0 0.0
        %991 = vmatprep.subr.mxu0 0.0
        %992 = vmatpush1.msra.mxu0 0.0
        %993 = vmatprep.subr.mxu0 0.0
        %994 = vmatpush1.msra.mxu0 %v878
        %995 = vmatprep.subr.mxu0 0.0
        %996 = vmatpush1.msra.mxu0 %v872
        %997 = vmatprep.subr.mxu0 0.0
        %998 = vmatpush2.msra.mxu0 0.0
        %999 = vmatprep.subr.mxu0 0.0
        %1000 = vmatpush2.msra.mxu0 0.0
        %1001 = vmatprep.subr.mxu0 0.0
        %1002 = vmatpush2.msra.mxu0 0.0
        %1003 = vmatprep.subr.mxu0 0.0
        %1004 = vmatpush2.msra.mxu0 0.0
        %1005 = vmatprep.subr.mxu0 0.0
        %1006 = vmatpush2.msra.mxu0 0.0
        %1007 = vmatprep.subr.mxu0 0.0
        %1008 = vmatpush2.msra.mxu0 0.0
        %1009 = vmatprep.subr.mxu0 0.0
        %1010 = vmatpush2.msra.mxu0 0.0
        %1011 = vmatprep.subr.mxu0 0.0
        %1012 = vmatpush2.msra.mxu0 0.0
        %1013 = vmatprep.subr.mxu0 0.0
        %1014 = vmatpush2.msra.mxu0 0.0
        %1015 = vmatprep.subr.mxu0 0.0
        %1016 = vmatpush2.msra.mxu0 0.0
        %1017 = vmatprep.subr.mxu0 0.0
        %1018 = vmatpush2.msra.mxu0 0.0
        %1019 = vmatprep.subr.mxu0 0.0
        %1020 = vmatpush2.msra.mxu0 0.0
        %1021 = vmatprep.subr.mxu0 0.0
        %1022 = vmatpush2.msra.mxu0 0.0
        %1023 = vmatprep.subr.mxu0 0.0
        %1024 = vmatpush2.msra.mxu0 0.0
        %1025 = vmatprep.subr.mxu0 0.0
        %1026 = vmatpush2.msra.mxu0 0.0
        %1027 = vmatprep.subr.mxu0 0.0
        %1028 = vmatpush2.msra.mxu0 0.0
        %1029 = vmatprep.mubr.f32.mxu0 0.0
        %1030 = vmatmul.mubr.f32.gmra.mxu0 %v963
        %v1031 = vpop.f32.mrf.mxu0
        %v1032 = vadd.f32 0.0, %v1031
        %v1033 = vpop.f32.mrf.mxu0
        %1034 = vdwg.mxu0
        %v1035 = vrcp.pop %v961
        %v1036 = vmul.f32 %v1032, %v1035
        %v1037 = vld [vmem:[#allocation11] sm:$0xff]
        %v1038 = vld [vmem:[#allocation11 + $0x8] sm:$0xff]
        %v1039 = vld [vmem:[#allocation11 + $0x10] sm:$0xff]
        %v1040 = vld [vmem:[#allocation11 + $0x18] sm:$0xff]
        %v1041 = vld [vmem:[#allocation11 + $0x20] sm:$0xff]
        %v1042 = vld [vmem:[#allocation11 + $0x28] sm:$0xff]
        %v1043 = vld [vmem:[#allocation11 + $0x30] sm:$0xff]
        %v1044 = vld [vmem:[#allocation11 + $0x38] sm:$0xff]
        %v1045 = vld [vmem:[#allocation11 + $0x40] sm:$0xff]
        %v1046 = vld [vmem:[#allocation11 + $0x48] sm:$0xff]
        %v1047 = vld [vmem:[#allocation11 + $0x50] sm:$0xff]
        %v1048 = vld [vmem:[#allocation11 + $0x58] sm:$0xff]
        %v1049 = vld [vmem:[#allocation11 + $0x60] sm:$0xff]
        %v1050 = vld [vmem:[#allocation11 + $0x68] sm:$0xff]
        %v1051 = vld [vmem:[#allocation11 + $0x70] sm:$0xff]
        %v1052 = vld [vmem:[#allocation11 + $0x78] sm:$0xff]
        %1053 = vmatprep.subr.mxu0 0.0
        %1054 = vmatpush1.xpose.msra.mxu0 0.0
        %1055 = vmatprep.subr.mxu0 0.0
        %1056 = vmatpush1.xpose.msra.mxu0 0.0
        %1057 = vmatprep.subr.mxu0 0.0
        %1058 = vmatpush1.xpose.msra.mxu0 0.0
        %1059 = vmatprep.subr.mxu0 0.0
        %1060 = vmatpush1.xpose.msra.mxu0 0.0
        %1061 = vmatprep.subr.mxu0 0.0
        %1062 = vmatpush1.xpose.msra.mxu0 0.0
        %1063 = vmatprep.subr.mxu0 0.0
        %1064 = vmatpush1.xpose.msra.mxu0 0.0
        %1065 = vmatprep.subr.mxu0 0.0
        %1066 = vmatpush1.xpose.msra.mxu0 0.0
        %1067 = vmatprep.subr.mxu0 0.0
        %1068 = vmatpush1.xpose.msra.mxu0 0.0
        %1069 = vmatprep.subr.mxu0 0.0
        %1070 = vmatpush1.xpose.msra.mxu0 0.0
        %1071 = vmatprep.subr.mxu0 0.0
        %1072 = vmatpush1.xpose.msra.mxu0 0.0
        %1073 = vmatprep.subr.mxu0 0.0
        %1074 = vmatpush1.xpose.msra.mxu0 0.0
        %1075 = vmatprep.subr.mxu0 0.0
        %1076 = vmatpush1.xpose.msra.mxu0 0.0
        %1077 = vmatprep.subr.mxu0 0.0
        %1078 = vmatpush1.xpose.msra.mxu0 0.0
        %1079 = vmatprep.subr.mxu0 0.0
        %1080 = vmatpush1.xpose.msra.mxu0 0.0
        %1081 = vmatprep.subr.mxu0 0.0
        %1082 = vmatpush1.xpose.msra.mxu0 %v771
        %1083 = vmatprep.subr.mxu0 0.0
        %1084 = vmatpush1.xpose.msra.mxu0 %v765
        %1085 = vmatprep.subr.mxu0 0.0
        %1086 = vmatpush2.xpose.msra.mxu0 0.0
        %1087 = vmatprep.subr.mxu0 0.0
        %1088 = vmatpush2.xpose.msra.mxu0 0.0
        %1089 = vmatprep.subr.mxu0 0.0
        %1090 = vmatpush2.xpose.msra.mxu0 0.0
        %1091 = vmatprep.subr.mxu0 0.0
        %1092 = vmatpush2.xpose.msra.mxu0 0.0
        %1093 = vmatprep.subr.mxu0 0.0
        %1094 = vmatpush2.xpose.msra.mxu0 0.0
        %1095 = vmatprep.subr.mxu0 0.0
        %1096 = vmatpush2.xpose.msra.mxu0 0.0
        %1097 = vmatprep.subr.mxu0 0.0
        %1098 = vmatpush2.xpose.msra.mxu0 0.0
        %1099 = vmatprep.subr.mxu0 0.0
        %1100 = vmatpush2.xpose.msra.mxu0 0.0
        %1101 = vmatprep.subr.mxu0 0.0
        %1102 = vmatpush2.xpose.msra.mxu0 0.0
        %1103 = vmatprep.subr.mxu0 0.0
        %1104 = vmatpush2.xpose.msra.mxu0 0.0
        %1105 = vmatprep.subr.mxu0 0.0
        %1106 = vmatpush2.xpose.msra.mxu0 0.0
        %1107 = vmatprep.subr.mxu0 0.0
        %1108 = vmatpush2.xpose.msra.mxu0 0.0
        %1109 = vmatprep.subr.mxu0 0.0
        %1110 = vmatpush2.xpose.msra.mxu0 0.0
        %1111 = vmatprep.subr.mxu0 0.0
        %1112 = vmatpush2.xpose.msra.mxu0 0.0
        %1113 = vmatprep.subr.mxu0 0.0
        %1114 = vmatpush2.xpose.msra.mxu0 0.0
        %1115 = vmatprep.subr.mxu0 0.0
        %1116 = vmatpush2.xpose.msra.mxu0 0.0
        %1117 = vmatprep.mubr.f32.mxu0 0.0
        %1118 = vmatmul.mubr.f32.gmra.mxu0 %v662
        %v1119 = vpop.f32.mrf.mxu0
        %v1120 = vadd.f32 0.0, %v1119
        %v1121 = vpop.f32.mrf.mxu0
        %1122 = vdwg.mxu0
        %v1123 = vsel %vm952, %v1120, -inf
        %1124 = vmax.xlane.f32.xlu0 %v1123
        %v1125 = vpop.xlane.xlu0 %1124
        %v1126 = vsub.f32 %v1120, %v1125
        %v1127 = vmul.f32 %v1126, 1.442695
        %v1128 = vpow.pop %v1127
        %v1129 = vsel %vm952, %v1128, 0.0
        %1130 = vadd.xlane.f32.xlu0 %v1129
        %v1131 = vpop.xlane.xlu0 %1130
        %v1133 = vsel %vm952, %v1128, 0
        %1135 = vmatprep.subr.mxu0 0.0
        %1136 = vmatpush1.msra.mxu0 0.0
        %1137 = vmatprep.subr.mxu0 0.0
        %1138 = vmatpush1.msra.mxu0 0.0
        %1139 = vmatprep.subr.mxu0 0.0
        %1140 = vmatpush1.msra.mxu0 0.0
        %1141 = vmatprep.subr.mxu0 0.0
        %1142 = vmatpush1.msra.mxu0 0.0
        %1143 = vmatprep.subr.mxu0 0.0
        %1144 = vmatpush1.msra.mxu0 0.0
        %1145 = vmatprep.subr.mxu0 0.0
        %1146 = vmatpush1.msra.mxu0 0.0
        %1147 = vmatprep.subr.mxu0 0.0
        %1148 = vmatpush1.msra.mxu0 0.0
        %1149 = vmatprep.subr.mxu0 0.0
        %1150 = vmatpush1.msra.mxu0 0.0
        %1151 = vmatprep.subr.mxu0 0.0
        %1152 = vmatpush1.msra.mxu0 0.0
        %1153 = vmatprep.subr.mxu0 0.0
        %1154 = vmatpush1.msra.mxu0 0.0
        %1155 = vmatprep.subr.mxu0 0.0
        %1156 = vmatpush1.msra.mxu0 0.0
        %1157 = vmatprep.subr.mxu0 0.0
        %1158 = vmatpush1.msra.mxu0 0.0
        %1159 = vmatprep.subr.mxu0 0.0
        %1160 = vmatpush1.msra.mxu0 0.0
        %1161 = vmatprep.subr.mxu0 0.0
        %1162 = vmatpush1.msra.mxu0 0.0
        %1163 = vmatprep.subr.mxu0 0.0
        %1164 = vmatpush1.msra.mxu0 %v880
        %1165 = vmatprep.subr.mxu0 0.0
        %1166 = vmatpush1.msra.mxu0 %v874
        %1167 = vmatprep.subr.mxu0 0.0
        %1168 = vmatpush2.msra.mxu0 0.0
        %1169 = vmatprep.subr.mxu0 0.0
        %1170 = vmatpush2.msra.mxu0 0.0
        %1171 = vmatprep.subr.mxu0 0.0
        %1172 = vmatpush2.msra.mxu0 0.0
        %1173 = vmatprep.subr.mxu0 0.0
        %1174 = vmatpush2.msra.mxu0 0.0
        %1175 = vmatprep.subr.mxu0 0.0
        %1176 = vmatpush2.msra.mxu0 0.0
        %1177 = vmatprep.subr.mxu0 0.0
        %1178 = vmatpush2.msra.mxu0 0.0
        %1179 = vmatprep.subr.mxu0 0.0
        %1180 = vmatpush2.msra.mxu0 0.0
        %1181 = vmatprep.subr.mxu0 0.0
        %1182 = vmatpush2.msra.mxu0 0.0
        %1183 = vmatprep.subr.mxu0 0.0
        %1184 = vmatpush2.msra.mxu0 0.0
        %1185 = vmatprep.subr.mxu0 0.0
        %1186 = vmatpush2.msra.mxu0 0.0
        %1187 = vmatprep.subr.mxu0 0.0
        %1188 = vmatpush2.msra.mxu0 0.0
        %1189 = vmatprep.subr.mxu0 0.0
        %1190 = vmatpush2.msra.mxu0 0.0
        %1191 = vmatprep.subr.mxu0 0.0
        %1192 = vmatpush2.msra.mxu0 0.0
        %1193 = vmatprep.subr.mxu0 0.0
        %1194 = vmatpush2.msra.mxu0 0.0
        %1195 = vmatprep.subr.mxu0 0.0
        %1196 = vmatpush2.msra.mxu0 0.0
        %1197 = vmatprep.subr.mxu0 0.0
        %1198 = vmatpush2.msra.mxu0 0.0
        %1199 = vmatprep.mubr.f32.mxu0 0.0
        %1200 = vmatmul.mubr.f32.gmra.mxu0 %v1133
        %v1201 = vpop.f32.mrf.mxu0
        %v1202 = vadd.f32 0.0, %v1201
        %v1203 = vpop.f32.mrf.mxu0
        %1204 = vdwg.mxu0
        %v1205 = vrcp.pop %v1131
        %v1206 = vmul.f32 %v1202, %v1205
        %v1207 = vld [vmem:[#allocation11 + $0x80] sm:$0xff]
        %v1208 = vld [vmem:[#allocation11 + $0x88] sm:$0xff]
        %v1209 = vld [vmem:[#allocation11 + $0x90] sm:$0xff]
        %v1210 = vld [vmem:[#allocation11 + $0x98] sm:$0xff]
        %v1211 = vld [vmem:[#allocation11 + $0xa0] sm:$0xff]
        %v1212 = vld [vmem:[#allocation11 + $0xa8] sm:$0xff]
        %v1213 = vld [vmem:[#allocation11 + $0xb0] sm:$0xff]
        %v1214 = vld [vmem:[#allocation11 + $0xb8] sm:$0xff]
        %v1215 = vld [vmem:[#allocation11 + $0xc0] sm:$0xff]
        %v1216 = vld [vmem:[#allocation11 + $0xc8] sm:$0xff]
        %v1217 = vld [vmem:[#allocation11 + $0xd0] sm:$0xff]
        %v1218 = vld [vmem:[#allocation11 + $0xd8] sm:$0xff]
        %v1219 = vld [vmem:[#allocation11 + $0xe0] sm:$0xff]
        %v1220 = vld [vmem:[#allocation11 + $0xe8] sm:$0xff]
        %v1221 = vld [vmem:[#allocation11 + $0xf0] sm:$0xff]
        %v1222 = vld [vmem:[#allocation11 + $0xf8] sm:$0xff]
        %1223 = vmatprep.subr.mxu0 0.0
        %1224 = vmatpush1.msra.mxu0 %v1222
        %1225 = vmatprep.subr.mxu0 0.0
        %1226 = vmatpush1.msra.mxu0 %v1221
        %1227 = vmatprep.subr.mxu0 0.0
        %1228 = vmatpush1.msra.mxu0 %v1220
        %1229 = vmatprep.subr.mxu0 0.0
        %1230 = vmatpush1.msra.mxu0 %v1219
        %1231 = vmatprep.subr.mxu0 0.0
        %1232 = vmatpush1.msra.mxu0 %v1218
        %1233 = vmatprep.subr.mxu0 0.0
        %1234 = vmatpush1.msra.mxu0 %v1217
        %1235 = vmatprep.subr.mxu0 0.0
        %1236 = vmatpush1.msra.mxu0 %v1216
        %1237 = vmatprep.subr.mxu0 0.0
        %1238 = vmatpush1.msra.mxu0 %v1215
        %1239 = vmatprep.subr.mxu0 0.0
        %1240 = vmatpush1.msra.mxu0 %v1214
        %1241 = vmatprep.subr.mxu0 0.0
        %1242 = vmatpush1.msra.mxu0 %v1213
        %1243 = vmatprep.subr.mxu0 0.0
        %1244 = vmatpush1.msra.mxu0 %v1212
        %1245 = vmatprep.subr.mxu0 0.0
        %1246 = vmatpush1.msra.mxu0 %v1211
        %1247 = vmatprep.subr.mxu0 0.0
        %1248 = vmatpush1.msra.mxu0 %v1210
        %1249 = vmatprep.subr.mxu0 0.0
        %1250 = vmatpush1.msra.mxu0 %v1209
        %1251 = vmatprep.subr.mxu0 0.0
        %1252 = vmatpush1.msra.mxu0 %v1208
        %1253 = vmatprep.subr.mxu0 0.0
        %1254 = vmatpush1.msra.mxu0 %v1207
        %1255 = vmatprep.subr.mxu0 0.0
        %1256 = vmatpush2.msra.mxu0 0.0
        %1257 = vmatprep.subr.mxu0 0.0
        %1258 = vmatpush2.msra.mxu0 0.0
        %1259 = vmatprep.subr.mxu0 0.0
        %1260 = vmatpush2.msra.mxu0 0.0
        %1261 = vmatprep.subr.mxu0 0.0
        %1262 = vmatpush2.msra.mxu0 0.0
        %1263 = vmatprep.subr.mxu0 0.0
        %1264 = vmatpush2.msra.mxu0 0.0
        %1265 = vmatprep.subr.mxu0 0.0
        %1266 = vmatpush2.msra.mxu0 0.0
        %1267 = vmatprep.subr.mxu0 0.0
        %1268 = vmatpush2.msra.mxu0 0.0
        %1269 = vmatprep.subr.mxu0 0.0
        %1270 = vmatpush2.msra.mxu0 0.0
        %1271 = vmatprep.subr.mxu0 0.0
        %1272 = vmatpush2.msra.mxu0 0.0
        %1273 = vmatprep.subr.mxu0 0.0
        %1274 = vmatpush2.msra.mxu0 0.0
        %1275 = vmatprep.subr.mxu0 0.0
        %1276 = vmatpush2.msra.mxu0 0.0
        %1277 = vmatprep.subr.mxu0 0.0
        %1278 = vmatpush2.msra.mxu0 0.0
        %1279 = vmatprep.subr.mxu0 0.0
        %1280 = vmatpush2.msra.mxu0 0.0
        %1281 = vmatprep.subr.mxu0 0.0
        %1282 = vmatpush2.msra.mxu0 0.0
        %1283 = vmatprep.subr.mxu0 0.0
        %1284 = vmatpush2.msra.mxu0 0.0
        %1285 = vmatprep.subr.mxu0 0.0
        %1286 = vmatpush2.msra.mxu0 0.0
        %1287 = vmatprep.mubr.f32.mxu0 0.0
        %1288 = vmatmul.mubr.f32.gmra.mxu0 %v1206
        %v1289 = vpop.f32.mrf.mxu0
        %v1290 = vadd.f32 0.0, %v1289
        %v1291 = vpop.f32.mrf.mxu0
        %1292 = vdwg.mxu0
        %1293 = vmatprep.subr.mxu0 0.0
        %1294 = vmatpush1.msra.mxu0 %v1052
        %1295 = vmatprep.subr.mxu0 0.0
        %1296 = vmatpush1.msra.mxu0 %v1051
        %1297 = vmatprep.subr.mxu0 0.0
        %1298 = vmatpush1.msra.mxu0 %v1050
        %1299 = vmatprep.subr.mxu0 0.0
        %1300 = vmatpush1.msra.mxu0 %v1049
        %1301 = vmatprep.subr.mxu0 0.0
        %1302 = vmatpush1.msra.mxu0 %v1048
        %1303 = vmatprep.subr.mxu0 0.0
        %1304 = vmatpush1.msra.mxu0 %v1047
        %1305 = vmatprep.subr.mxu0 0.0
        %1306 = vmatpush1.msra.mxu0 %v1046
        %1307 = vmatprep.subr.mxu0 0.0
        %1308 = vmatpush1.msra.mxu0 %v1045
        %1309 = vmatprep.subr.mxu0 0.0
        %1310 = vmatpush1.msra.mxu0 %v1044
        %1311 = vmatprep.subr.mxu0 0.0
        %1312 = vmatpush1.msra.mxu0 %v1043
        %1313 = vmatprep.subr.mxu0 0.0
        %1314 = vmatpush1.msra.mxu0 %v1042
        %1315 = vmatprep.subr.mxu0 0.0
        %1316 = vmatpush1.msra.mxu0 %v1041
        %1317 = vmatprep.subr.mxu0 0.0
        %1318 = vmatpush1.msra.mxu0 %v1040
        %1319 = vmatprep.subr.mxu0 0.0
        %1320 = vmatpush1.msra.mxu0 %v1039
        %1321 = vmatprep.subr.mxu0 0.0
        %1322 = vmatpush1.msra.mxu0 %v1038
        %1323 = vmatprep.subr.mxu0 0.0
        %1324 = vmatpush1.msra.mxu0 %v1037
        %1325 = vmatprep.subr.mxu0 0.0
        %1326 = vmatpush2.msra.mxu0 0.0
        %1327 = vmatprep.subr.mxu0 0.0
        %1328 = vmatpush2.msra.mxu0 0.0
        %1329 = vmatprep.subr.mxu0 0.0
        %1330 = vmatpush2.msra.mxu0 0.0
        %1331 = vmatprep.subr.mxu0 0.0
        %1332 = vmatpush2.msra.mxu0 0.0
        %1333 = vmatprep.subr.mxu0 0.0
        %1334 = vmatpush2.msra.mxu0 0.0
        %1335 = vmatprep.subr.mxu0 0.0
        %1336 = vmatpush2.msra.mxu0 0.0
        %1337 = vmatprep.subr.mxu0 0.0
        %1338 = vmatpush2.msra.mxu0 0.0
        %1339 = vmatprep.subr.mxu0 0.0
        %1340 = vmatpush2.msra.mxu0 0.0
        %1341 = vmatprep.subr.mxu0 0.0
        %1342 = vmatpush2.msra.mxu0 0.0
        %1343 = vmatprep.subr.mxu0 0.0
        %1344 = vmatpush2.msra.mxu0 0.0
        %1345 = vmatprep.subr.mxu0 0.0
        %1346 = vmatpush2.msra.mxu0 0.0
        %1347 = vmatprep.subr.mxu0 0.0
        %1348 = vmatpush2.msra.mxu0 0.0
        %1349 = vmatprep.subr.mxu0 0.0
        %1350 = vmatpush2.msra.mxu0 0.0
        %1351 = vmatprep.subr.mxu0 0.0
        %1352 = vmatpush2.msra.mxu0 0.0
        %1353 = vmatprep.subr.mxu0 0.0
        %1354 = vmatpush2.msra.mxu0 0.0
        %1355 = vmatprep.subr.mxu0 0.0
        %1356 = vmatpush2.msra.mxu0 0.0
        %1357 = vmatprep.mubr.f32.mxu0 0.0
        %1358 = vmatmul.mubr.f32.gmra.mxu0 %v1036
        %v1359 = vpop.f32.mrf.mxu0
        %v1360 = vadd.f32 %v1290, %v1359
        %v1361 = vpop.f32.mrf.mxu0
        %1362 = vdwg.mxu0
        %1363 = vst [vmem:[%s489] sm:$0xff] %v1360
        %s1364 = sand.u32 %s276, 1
        %s1365 = scalar_lea.sflag [#allocation4], %s1364
        %s1366 = sand.u32 %s276, 1
        %s1367 = smul.addr %s1366, 8
        %s1368 = scalar_lea.vmem [#allocation13], %s1367
        // Predicated region
        $region85: #{tpu_custom_call.1} parent=59 // pred_check
          %p1369 = pneg %p286
        $region86: #{tpu_custom_call.1} parent=59 // pred_check_branch
          %1371 = sbr.rel (%p1369) target = $region88
        $region87: #{tpu_custom_call.1} parent=59 // pred_region
          %s1373 = ssub.s32 128, 128
          %1374 = vsyncadd %s1365, %s1373
          %s1375 = sadd.s32 %s37, %s36
          %s1376 = smul.addr %s1375, 128
          %s1377 = scalar_lea.hbm %s10, %s1376
          %s1379 = sshll.u32 %s1368, 4
          %s1380 = int_to_ptr.vmem [resolvable:$true] %s1379
          %1382 = dma.vmem_to_hbm [thread:$0]  %s1380, 128, %s1377, %s1365
        $region88: #{tpu_custom_call.1} parent=59 // pred_fallthru
          _
      $region60: #{tpu_custom_call.1} parent=5 // pred_fallthru
        _
      %p1383 = scmp.le.s32.totalorder 2, %s27
      // Predicated region
      $region89: #{tpu_custom_call.1} parent=5 // pred_check
        %p1384 = pneg %p1383
      $region90: #{tpu_custom_call.1} parent=5 // pred_check_branch
        %1386 = sbr.rel (%p1384) target = $region92
      $region91: #{tpu_custom_call.1} parent=5 // pred_region
        %s1387 = ssub.s32 %s27, 2
        // Predicated region
        $region93: #{tpu_custom_call.1} parent=91 // pred_check
          %p1388 = pneg %p292
        $region94: #{tpu_custom_call.1} parent=91 // pred_check_branch
          %1390 = sbr.rel (%p1388) target = $region96
        $region95: #{tpu_custom_call.1} parent=91 // pred_region
          %s1391 = sand.u32 %s277, 1
          %s1392 = scalar_lea.sflag [#allocation4], %s1391
          %s1393 = sand.u32 %s277, 1
          %s1394 = smul.addr %s1393, 8
          %s1395 = scalar_lea.vmem [#allocation13], %s1394
          %1396 = dma.done %s1392, 128
        $region96: #{tpu_custom_call.1} parent=91 // pred_fallthru
          _
      $region92: #{tpu_custom_call.1} parent=5 // pred_fallthru
        _
    $region6: #{tpu_custom_call.1} parent=1 // loop_footer
      %s31 = sadd.s32 1, %s27
    $region7: #{tpu_custom_call.1} parent=1 // loop_footer_branch
      %26 = sbr.rel target = $region3
    $region8: #{tpu_custom_call.1} parent=1 // loop_exit
      _
    %1397 = vsyncpa [#allocation3], 1
    %s1398 = scalar_lea.sflag [#allocation3], 1
    %1399 = vsyncpa %s1398, 1
    %1400 = vsyncpa [#allocation6], 1
    %s1401 = scalar_lea.sflag [#allocation6], 1
    %1402 = vsyncpa %s1401, 1
    %1403 = vsyncpa [#allocation9], 1
    %1404 = vsyncpa [#allocation12], 1
    %1405 = vsyncpa [#allocation4], 1
    %s1406 = scalar_lea.sflag [#allocation4], 1
    %1407 = vsyncpa %s1406, 1

</llo_original>
